<compile_context>
chip_gen: v5e
topology: v5e:2x2
jax: 0.10.0
libtpu: 0.0.40
codegen_flags: <defaults>
</compile_context>

<pallas_src>
import functools

import jax
import jax.numpy as jnp
from jax.experimental import pallas as pl
from jax.experimental.pallas import tpu as pltpu


# ----------------------------- fused forward kernel --------------------------

def _fused_rnn_kernel(*refs, S, B, E, H, V, L):
    # inputs: emb_flat, [w_ih_t, w_hh_t, b] * L, dec_w_t, dec_b, h0, c0
    # outputs: log_probs (S*B, V), h_n (L, B, H), c_n (L, B, H)
    # scratch: act_sc (S*B, H)
    emb_ref = refs[0]
    lyr = refs[1:1 + 3 * L]
    dec_w_ref = refs[1 + 3 * L]
    dec_b_ref = refs[2 + 3 * L]
    h0_ref = refs[3 + 3 * L]
    c0_ref = refs[4 + 3 * L]
    out_ref = refs[5 + 3 * L]
    hn_ref = refs[6 + 3 * L]
    cn_ref = refs[7 + 3 * L]
    act_sc = refs[8 + 3 * L]

    x = emb_ref[...]                                    # (S*B, E) layer-0 input

    for l in range(L):
        w_ih_t = lyr[3 * l][...]                        # (in_dim, 4H)
        w_hh_t = lyr[3 * l + 1][...]                    # (H, 4H)
        bias = lyr[3 * l + 2][...]                      # (1, 4H)

        # Batched input projection for all timesteps at once: one MXU matmul
        # with M = S*B instead of S tiny M=B matmuls on the serial path.
        xp = jnp.dot(x, w_ih_t, preferred_element_type=jnp.float32) + bias  # (S*B, 4H)

        h = h0_ref[l]                                   # (B, H)
        c = c0_ref[l]                                   # (B, H)

        # Static full unroll of the time recurrence (S is small & static);
        # h/c stay in vregs across steps.
        for t in range(S):
            gates = (xp[t * B:(t + 1) * B, :]
                     + jnp.dot(h, w_hh_t, preferred_element_type=jnp.float32))
            # PyTorch gate order: i, f, g, o.  (At H % 128 == 0 these slices
            # are vreg-aligned; here they are 32-lane sub-slices — cheap.)
            i_g = jax.nn.sigmoid(gates[:, 0 * H:1 * H])
            f_g = jax.nn.sigmoid(gates[:, 1 * H:2 * H])
            g_g = jnp.tanh(gates[:, 2 * H:3 * H])
            o_g = jax.nn.sigmoid(gates[:, 3 * H:4 * H])
            c = f_g * c + i_g * g_g
            h = o_g * jnp.tanh(c)
            act_sc[pl.ds(t * B, B), :] = h              # row index = t*B + b

        hn_ref[l] = h                                   # final states: written once
        cn_ref[l] = c
        x = act_sc[...]                                 # (S*B, H) -> next layer / decoder

    # Decoder + log_softmax fused; output store is lane-dense (V on lanes).
    logits = (jnp.dot(x, dec_w_ref[...], preferred_element_type=jnp.float32)
              + dec_b_ref[...])                         # (S*B, V)
    m = jnp.max(logits, axis=-1, keepdims=True)
    s = logits - m
    lse = jnp.log(jnp.sum(jnp.exp(s), axis=-1, keepdims=True))
    out_ref[...] = s - lse


def rnn_forward_pallas(emb_flat, lstm_params, dec_w_t, dec_b, h0, c0, S):
    """emb_flat: (S*B, E); lstm_params: list of {w_ih_t, w_hh_t, b};
    dec_w_t: (H, V); dec_b: (1, V); h0/c0: (L, B, H)."""
    N, E = emb_flat.shape
    L, B, H = h0.shape
    V = dec_w_t.shape[1]
    assert N == S * B

    kernel = functools.partial(_fused_rnn_kernel, S=S, B=B, E=E, H=H, V=V, L=L)
    args = [emb_flat]
    for lw in lstm_params:
        args += [lw["w_ih_t"], lw["w_hh_t"], lw["b"]]
    args += [dec_w_t, dec_b, h0, c0]

    log_probs, h_n, c_n = pl.pallas_call(
        kernel,
        out_shape=(jax.ShapeDtypeStruct((N, V), jnp.float32),
                   jax.ShapeDtypeStruct((L, B, H), jnp.float32),
                   jax.ShapeDtypeStruct((L, B, H), jnp.float32)),
        scratch_shapes=[pltpu.VMEM((N, H), jnp.float32)],
    )(*args)
    return log_probs, h_n, c_n


# ------------------------------- full forward --------------------------------

def rnn_model_forward(params, tokens, hidden):
    """RNNModel('LSTM', ...) forward, eval mode (dropout = identity)."""
    h0, c0 = hidden                                 # each (n_layers, B, H)
    emb = params["encoder_w"][tokens]               # (S, B, E) gather (JAX glue)
    S, B, E = emb.shape
    emb_flat = emb.reshape(S * B, E)                # row index = t*B + b
    log_probs, h_n, c_n = rnn_forward_pallas(
        emb_flat, params["lstm"], params["decoder_w_t"], params["decoder_b"],
        h0, c0, S)
    return log_probs, (h_n, c_n)


# ------------------------------ param creation --------------------------------

def init_params(key, vocab_size, emb_dim, hidden_dim, n_layers):
    keys = jax.random.split(key, 3 + 4 * n_layers)
    initrange = 0.1
    params = {}
    params["encoder_w"] = jax.random.uniform(
        keys[0], (vocab_size, emb_dim), jnp.float32, -initrange, initrange)
    params["decoder_w_t"] = jax.random.uniform(
        keys[1], (hidden_dim, vocab_size), jnp.float32, -initrange, initrange)
    params["decoder_b"] = jnp.zeros((1, vocab_size), jnp.float32)

    stdv = 1.0 / (hidden_dim ** 0.5)
    lstm = []
    for l in range(n_layers):
        in_dim = emb_dim if l == 0 else hidden_dim
        k = keys[3 + 4 * l: 3 + 4 * (l + 1)]
        w_ih = jax.random.uniform(k[0], (4 * hidden_dim, in_dim),
                                  jnp.float32, -stdv, stdv)
        w_hh = jax.random.uniform(k[1], (4 * hidden_dim, hidden_dim),
                                  jnp.float32, -stdv, stdv)
        b_ih = jax.random.uniform(k[2], (4 * hidden_dim,), jnp.float32, -stdv, stdv)
        b_hh = jax.random.uniform(k[3], (4 * hidden_dim,), jnp.float32, -stdv, stdv)
        lstm.append({
            "w_ih_t": w_ih.T,                                   # (in_dim, 4H)
            "w_hh_t": w_hh.T,                                   # (H, 4H)
            "b": (b_ih + b_hh).reshape(1, 4 * hidden_dim),      # (1, 4H)
        })
    params["lstm"] = lstm
    return params


# --------------------------- pure-JAX reference -------------------------------

def rnn_model_forward_ref(params, tokens, hidden):
    hp = jax.lax.Precision.HIGHEST
    h_all, c_all = hidden
    emb = params["encoder_w"][tokens]
    S, B, E = emb.shape
    L, _, H = h_all.shape
    h = [h_all[l] for l in range(L)]
    c = [c_all[l] for l in range(L)]
    outs = []
    for t in range(S):
        xt = emb[t]
        for l in range(L):
            lw = params["lstm"][l]
            gates = (jnp.dot(xt, lw["w_ih_t"], precision=hp)
                     + jnp.dot(h[l], lw["w_hh_t"], precision=hp) + lw["b"])
            i = jax.nn.sigmoid(gates[:, 0 * H:1 * H])
            f = jax.nn.sigmoid(gates[:, 1 * H:2 * H])
            g = jnp.tanh(gates[:, 2 * H:3 * H])
            o = jax.nn.sigmoid(gates[:, 3 * H:4 * H])
            c[l] = f * c[l] + i * g
            h[l] = o * jnp.tanh(c[l])
            xt = h[l]
        outs.append(xt)
    flat = jnp.stack(outs, axis=0).reshape(S * B, H)
    logits = (jnp.dot(flat, params["decoder_w_t"], precision=hp)
              + params["decoder_b"])
    return jax.nn.log_softmax(logits, axis=-1), (jnp.stack(h), jnp.stack(c))


if __name__ == "__main__":
    vocab_size, emb_dim, hidden_dim, n_layers = 128, 32, 32, 2
    seq_len, batch = 8, 4

    key = jax.random.PRNGKey(0)
    pkey, tkey = jax.random.split(key)
    params = init_params(pkey, vocab_size, emb_dim, hidden_dim, n_layers)

    tokens = jax.random.randint(tkey, (seq_len, batch), 0, vocab_size,
                                dtype=jnp.int32)
    hidden = (jnp.zeros((n_layers, batch, hidden_dim), jnp.float32),
              jnp.zeros((n_layers, batch, hidden_dim), jnp.float32))

    fwd = jax.jit(rnn_model_forward)
    log_probs, (h_n, c_n) = fwd(params, tokens, hidden)
    jax.block_until_ready((log_probs, h_n, c_n))

    assert log_probs.shape == (seq_len * batch, vocab_size)
    assert h_n.shape == (n_layers, batch, hidden_dim)
    assert c_n.shape == (n_layers, batch, hidden_dim)

    # log_softmax rows should (exp-)sum to ~1
    row_sums = jnp.exp(log_probs).sum(axis=-1)
    assert jnp.allclose(row_sums, 1.0, atol=1e-4)

    # compare against pure-JAX reference
    ref_lp, (ref_h, ref_c) = rnn_model_forward_ref(params, tokens, hidden)
    assert jnp.allclose(log_probs, ref_lp, atol=2e-3, rtol=2e-3), \
        float(jnp.max(jnp.abs(log_probs - ref_lp)))
    assert jnp.allclose(h_n, ref_h, atol=2e-3, rtol=2e-3)
    assert jnp.allclose(c_n, ref_c, atol=2e-3, rtol=2e-3)

    print("KERNEL_OK")
</pallas_src>

<mosaic_0001>
module attributes {stable_mosaic.version = 11 : i64} {
  func.func @_fused_rnn_kernel(%arg0: memref<32x32xf32, #tpu.memory_space<vmem>>, %arg1: memref<32x128xf32, #tpu.memory_space<vmem>>, %arg2: memref<32x128xf32, #tpu.memory_space<vmem>>, %arg3: memref<1x128xf32, #tpu.memory_space<vmem>>, %arg4: memref<32x128xf32, #tpu.memory_space<vmem>>, %arg5: memref<32x128xf32, #tpu.memory_space<vmem>>, %arg6: memref<1x128xf32, #tpu.memory_space<vmem>>, %arg7: memref<32x128xf32, #tpu.memory_space<vmem>>, %arg8: memref<1x128xf32, #tpu.memory_space<vmem>>, %arg9: memref<2x4x32xf32, #tpu.memory_space<vmem>>, %arg10: memref<2x4x32xf32, #tpu.memory_space<vmem>>, %arg11: memref<32x128xf32, #tpu.memory_space<vmem>>, %arg12: memref<2x4x32xf32, #tpu.memory_space<vmem>>, %arg13: memref<2x4x32xf32, #tpu.memory_space<vmem>>, %arg14: memref<32x32xf32, #tpu.memory_space<vmem>>) attributes {dimension_semantics = [], scalar_prefetch = 0 : i64, scratch_operands = 1 : i64, tpu.core_type = #tpu.core_type<tc>} {
    %c0 = arith.constant 0 : index
    %c0_0 = arith.constant 0 : index
    %0 = vector.load %arg0[%c0, %c0_0] : memref<32x32xf32, #tpu.memory_space<vmem>>, vector<32x32xf32>
    %c0_1 = arith.constant 0 : index
    %c0_2 = arith.constant 0 : index
    %1 = vector.load %arg1[%c0_1, %c0_2] : memref<32x128xf32, #tpu.memory_space<vmem>>, vector<32x128xf32>
    %c0_3 = arith.constant 0 : index
    %c0_4 = arith.constant 0 : index
    %2 = vector.load %arg2[%c0_3, %c0_4] : memref<32x128xf32, #tpu.memory_space<vmem>>, vector<32x128xf32>
    %c0_5 = arith.constant 0 : index
    %c0_6 = arith.constant 0 : index
    %3 = vector.load %arg3[%c0_5, %c0_6] : memref<1x128xf32, #tpu.memory_space<vmem>>, vector<1x128xf32>
    %cst = arith.constant dense<0.000000e+00> : vector<32x128xf32>
    %4 = tpu.matmul %0, %1, %cst {dimension_numbers = #tpu.dot_dimension_numbers<[1], [0], [0], [1], [0, 0, 1, 1], [], []>} : vector<32x32xf32>, vector<32x128xf32>, vector<32x128xf32> -> vector<32x128xf32>
    %5 = vector.broadcast %3 : vector<1x128xf32> to vector<32x128xf32>
    %6 = arith.addf %4, %5 : vector<32x128xf32>
    %c0_7 = arith.constant 0 : index
    %c0_8 = arith.constant 0 : index
    %c0_9 = arith.constant 0 : index
    %7 = vector.load %arg9[%c0_7, %c0_8, %c0_9] : memref<2x4x32xf32, #tpu.memory_space<vmem>>, vector<1x4x32xf32>
    %8 = vector.shape_cast %7 : vector<1x4x32xf32> to vector<4x32xf32>
    %c0_10 = arith.constant 0 : index
    %c0_11 = arith.constant 0 : index
    %c0_12 = arith.constant 0 : index
    %9 = vector.load %arg10[%c0_10, %c0_11, %c0_12] : memref<2x4x32xf32, #tpu.memory_space<vmem>>, vector<1x4x32xf32>
    %10 = vector.shape_cast %9 : vector<1x4x32xf32> to vector<4x32xf32>
    %11 = vector.extract_strided_slice %6 {offsets = [0, 0], sizes = [4, 128], strides = [1, 1]} : vector<32x128xf32> to vector<4x128xf32>
    %cst_13 = arith.constant dense<0.000000e+00> : vector<4x128xf32>
    %12 = tpu.matmul %8, %2, %cst_13 {dimension_numbers = #tpu.dot_dimension_numbers<[1], [0], [0], [1], [0, 0, 1, 1], [], []>} : vector<4x32xf32>, vector<32x128xf32>, vector<4x128xf32> -> vector<4x128xf32>
    %13 = arith.addf %11, %12 : vector<4x128xf32>
    %14 = vector.extract_strided_slice %13 {offsets = [0, 0], sizes = [4, 32], strides = [1, 1]} : vector<4x128xf32> to vector<4x32xf32>
    %15 = arith.negf %14 : vector<4x32xf32>
    %16 = math.exp %15 : vector<4x32xf32>
    %cst_14 = arith.constant 1.000000e+00 : f32
    %17 = vector.broadcast %cst_14 : f32 to vector<4x32xf32>
    %18 = arith.addf %17, %16 : vector<4x32xf32>
    %19 = arith.divf %17, %18 : vector<4x32xf32>
    %20 = vector.extract_strided_slice %13 {offsets = [0, 32], sizes = [4, 32], strides = [1, 1]} : vector<4x128xf32> to vector<4x32xf32>
    %21 = arith.negf %20 : vector<4x32xf32>
    %22 = math.exp %21 : vector<4x32xf32>
    %cst_15 = arith.constant 1.000000e+00 : f32
    %23 = vector.broadcast %cst_15 : f32 to vector<4x32xf32>
    %24 = arith.addf %23, %22 : vector<4x32xf32>
    %25 = arith.divf %23, %24 : vector<4x32xf32>
    %26 = vector.extract_strided_slice %13 {offsets = [0, 64], sizes = [4, 32], strides = [1, 1]} : vector<4x128xf32> to vector<4x32xf32>
    %27 = math.tanh %26 : vector<4x32xf32>
    %28 = vector.extract_strided_slice %13 {offsets = [0, 96], sizes = [4, 32], strides = [1, 1]} : vector<4x128xf32> to vector<4x32xf32>
    %29 = arith.negf %28 : vector<4x32xf32>
    %30 = math.exp %29 : vector<4x32xf32>
    %cst_16 = arith.constant 1.000000e+00 : f32
    %31 = vector.broadcast %cst_16 : f32 to vector<4x32xf32>
    %32 = arith.addf %31, %30 : vector<4x32xf32>
    %33 = arith.divf %31, %32 : vector<4x32xf32>
    %34 = arith.mulf %25, %10 : vector<4x32xf32>
    %35 = arith.mulf %19, %27 : vector<4x32xf32>
    %36 = arith.addf %34, %35 : vector<4x32xf32>
    %37 = math.tanh %36 : vector<4x32xf32>
    %38 = arith.mulf %33, %37 : vector<4x32xf32>
    %c0_17 = arith.constant 0 : index
    %c0_18 = arith.constant 0 : index
    %39 = vector.load %arg14[%c0_17, %c0_18] : memref<32x32xf32, #tpu.memory_space<vmem>>, vector<4x32xf32>
    tpu.vector_store %arg14[%c0_17, %c0_18], %38 {strides = array<i32>} : memref<32x32xf32, #tpu.memory_space<vmem>>, vector<4x32xf32>,
    %40 = vector.extract_strided_slice %6 {offsets = [4, 0], sizes = [4, 128], strides = [1, 1]} : vector<32x128xf32> to vector<4x128xf32>
    %cst_19 = arith.constant dense<0.000000e+00> : vector<4x128xf32>
    %41 = tpu.matmul %38, %2, %cst_19 {dimension_numbers = #tpu.dot_dimension_numbers<[1], [0], [0], [1], [0, 0, 1, 1], [], []>} : vector<4x32xf32>, vector<32x128xf32>, vector<4x128xf32> -> vector<4x128xf32>
    %42 = arith.addf %40, %41 : vector<4x128xf32>
    %43 = vector.extract_strided_slice %42 {offsets = [0, 0], sizes = [4, 32], strides = [1, 1]} : vector<4x128xf32> to vector<4x32xf32>
    %44 = arith.negf %43 : vector<4x32xf32>
    %45 = math.exp %44 : vector<4x32xf32>
    %cst_20 = arith.constant 1.000000e+00 : f32
    %46 = vector.broadcast %cst_20 : f32 to vector<4x32xf32>
    %47 = arith.addf %46, %45 : vector<4x32xf32>
    %48 = arith.divf %46, %47 : vector<4x32xf32>
    %49 = vector.extract_strided_slice %42 {offsets = [0, 32], sizes = [4, 32], strides = [1, 1]} : vector<4x128xf32> to vector<4x32xf32>
    %50 = arith.negf %49 : vector<4x32xf32>
    %51 = math.exp %50 : vector<4x32xf32>
    %cst_21 = arith.constant 1.000000e+00 : f32
    %52 = vector.broadcast %cst_21 : f32 to vector<4x32xf32>
    %53 = arith.addf %52, %51 : vector<4x32xf32>
    %54 = arith.divf %52, %53 : vector<4x32xf32>
    %55 = vector.extract_strided_slice %42 {offsets = [0, 64], sizes = [4, 32], strides = [1, 1]} : vector<4x128xf32> to vector<4x32xf32>
    %56 = math.tanh %55 : vector<4x32xf32>
    %57 = vector.extract_strided_slice %42 {offsets = [0, 96], sizes = [4, 32], strides = [1, 1]} : vector<4x128xf32> to vector<4x32xf32>
    %58 = arith.negf %57 : vector<4x32xf32>
    %59 = math.exp %58 : vector<4x32xf32>
    %cst_22 = arith.constant 1.000000e+00 : f32
    %60 = vector.broadcast %cst_22 : f32 to vector<4x32xf32>
    %61 = arith.addf %60, %59 : vector<4x32xf32>
    %62 = arith.divf %60, %61 : vector<4x32xf32>
    %63 = arith.mulf %54, %36 : vector<4x32xf32>
    %64 = arith.mulf %48, %56 : vector<4x32xf32>
    %65 = arith.addf %63, %64 : vector<4x32xf32>
    %66 = math.tanh %65 : vector<4x32xf32>
    %67 = arith.mulf %62, %66 : vector<4x32xf32>
    %c4 = arith.constant 4 : index
    %c0_23 = arith.constant 0 : index
    %68 = vector.load %arg14[%c4, %c0_23] : memref<32x32xf32, #tpu.memory_space<vmem>>, vector<4x32xf32>
    tpu.vector_store %arg14[%c4, %c0_23], %67 {strides = array<i32>} : memref<32x32xf32, #tpu.memory_space<vmem>>, vector<4x32xf32>,
    %69 = vector.extract_strided_slice %6 {offsets = [8, 0], sizes = [4, 128], strides = [1, 1]} : vector<32x128xf32> to vector<4x128xf32>
    %cst_24 = arith.constant dense<0.000000e+00> : vector<4x128xf32>
    %70 = tpu.matmul %67, %2, %cst_24 {dimension_numbers = #tpu.dot_dimension_numbers<[1], [0], [0], [1], [0, 0, 1, 1], [], []>} : vector<4x32xf32>, vector<32x128xf32>, vector<4x128xf32> -> vector<4x128xf32>
    %71 = arith.addf %69, %70 : vector<4x128xf32>
    %72 = vector.extract_strided_slice %71 {offsets = [0, 0], sizes = [4, 32], strides = [1, 1]} : vector<4x128xf32> to vector<4x32xf32>
    %73 = arith.negf %72 : vector<4x32xf32>
    %74 = math.exp %73 : vector<4x32xf32>
    %cst_25 = arith.constant 1.000000e+00 : f32
    %75 = vector.broadcast %cst_25 : f32 to vector<4x32xf32>
    %76 = arith.addf %75, %74 : vector<4x32xf32>
    %77 = arith.divf %75, %76 : vector<4x32xf32>
    %78 = vector.extract_strided_slice %71 {offsets = [0, 32], sizes = [4, 32], strides = [1, 1]} : vector<4x128xf32> to vector<4x32xf32>
    %79 = arith.negf %78 : vector<4x32xf32>
    %80 = math.exp %79 : vector<4x32xf32>
    %cst_26 = arith.constant 1.000000e+00 : f32
    %81 = vector.broadcast %cst_26 : f32 to vector<4x32xf32>
    %82 = arith.addf %81, %80 : vector<4x32xf32>
    %83 = arith.divf %81, %82 : vector<4x32xf32>
    %84 = vector.extract_strided_slice %71 {offsets = [0, 64], sizes = [4, 32], strides = [1, 1]} : vector<4x128xf32> to vector<4x32xf32>
    %85 = math.tanh %84 : vector<4x32xf32>
    %86 = vector.extract_strided_slice %71 {offsets = [0, 96], sizes = [4, 32], strides = [1, 1]} : vector<4x128xf32> to vector<4x32xf32>
    %87 = arith.negf %86 : vector<4x32xf32>
    %88 = math.exp %87 : vector<4x32xf32>
    %cst_27 = arith.constant 1.000000e+00 : f32
    %89 = vector.broadcast %cst_27 : f32 to vector<4x32xf32>
    %90 = arith.addf %89, %88 : vector<4x32xf32>
    %91 = arith.divf %89, %90 : vector<4x32xf32>
    %92 = arith.mulf %83, %65 : vector<4x32xf32>
    %93 = arith.mulf %77, %85 : vector<4x32xf32>
    %94 = arith.addf %92, %93 : vector<4x32xf32>
    %95 = math.tanh %94 : vector<4x32xf32>
    %96 = arith.mulf %91, %95 : vector<4x32xf32>
    %c8 = arith.constant 8 : index
    %c0_28 = arith.constant 0 : index
    %97 = vector.load %arg14[%c8, %c0_28] : memref<32x32xf32, #tpu.memory_space<vmem>>, vector<4x32xf32>
    tpu.vector_store %arg14[%c8, %c0_28], %96 {strides = array<i32>} : memref<32x32xf32, #tpu.memory_space<vmem>>, vector<4x32xf32>,
    %98 = vector.extract_strided_slice %6 {offsets = [12, 0], sizes = [4, 128], strides = [1, 1]} : vector<32x128xf32> to vector<4x128xf32>
    %cst_29 = arith.constant dense<0.000000e+00> : vector<4x128xf32>
    %99 = tpu.matmul %96, %2, %cst_29 {dimension_numbers = #tpu.dot_dimension_numbers<[1], [0], [0], [1], [0, 0, 1, 1], [], []>} : vector<4x32xf32>, vector<32x128xf32>, vector<4x128xf32> -> vector<4x128xf32>
    %100 = arith.addf %98, %99 : vector<4x128xf32>
    %101 = vector.extract_strided_slice %100 {offsets = [0, 0], sizes = [4, 32], strides = [1, 1]} : vector<4x128xf32> to vector<4x32xf32>
    %102 = arith.negf %101 : vector<4x32xf32>
    %103 = math.exp %102 : vector<4x32xf32>
    %cst_30 = arith.constant 1.000000e+00 : f32
    %104 = vector.broadcast %cst_30 : f32 to vector<4x32xf32>
    %105 = arith.addf %104, %103 : vector<4x32xf32>
    %106 = arith.divf %104, %105 : vector<4x32xf32>
    %107 = vector.extract_strided_slice %100 {offsets = [0, 32], sizes = [4, 32], strides = [1, 1]} : vector<4x128xf32> to vector<4x32xf32>
    %108 = arith.negf %107 : vector<4x32xf32>
    %109 = math.exp %108 : vector<4x32xf32>
    %cst_31 = arith.constant 1.000000e+00 : f32
    %110 = vector.broadcast %cst_31 : f32 to vector<4x32xf32>
    %111 = arith.addf %110, %109 : vector<4x32xf32>
    %112 = arith.divf %110, %111 : vector<4x32xf32>
    %113 = vector.extract_strided_slice %100 {offsets = [0, 64], sizes = [4, 32], strides = [1, 1]} : vector<4x128xf32> to vector<4x32xf32>
    %114 = math.tanh %113 : vector<4x32xf32>
    %115 = vector.extract_strided_slice %100 {offsets = [0, 96], sizes = [4, 32], strides = [1, 1]} : vector<4x128xf32> to vector<4x32xf32>
    %116 = arith.negf %115 : vector<4x32xf32>
    %117 = math.exp %116 : vector<4x32xf32>
    %cst_32 = arith.constant 1.000000e+00 : f32
    %118 = vector.broadcast %cst_32 : f32 to vector<4x32xf32>
    %119 = arith.addf %118, %117 : vector<4x32xf32>
    %120 = arith.divf %118, %119 : vector<4x32xf32>
    %121 = arith.mulf %112, %94 : vector<4x32xf32>
    %122 = arith.mulf %106, %114 : vector<4x32xf32>
    %123 = arith.addf %121, %122 : vector<4x32xf32>
    %124 = math.tanh %123 : vector<4x32xf32>
    %125 = arith.mulf %120, %124 : vector<4x32xf32>
    %c12 = arith.constant 12 : index
    %c0_33 = arith.constant 0 : index
    %126 = vector.load %arg14[%c12, %c0_33] : memref<32x32xf32, #tpu.memory_space<vmem>>, vector<4x32xf32>
    tpu.vector_store %arg14[%c12, %c0_33], %125 {strides = array<i32>} : memref<32x32xf32, #tpu.memory_space<vmem>>, vector<4x32xf32>,
    %127 = vector.extract_strided_slice %6 {offsets = [16, 0], sizes = [4, 128], strides = [1, 1]} : vector<32x128xf32> to vector<4x128xf32>
    %cst_34 = arith.constant dense<0.000000e+00> : vector<4x128xf32>
    %128 = tpu.matmul %125, %2, %cst_34 {dimension_numbers = #tpu.dot_dimension_numbers<[1], [0], [0], [1], [0, 0, 1, 1], [], []>} : vector<4x32xf32>, vector<32x128xf32>, vector<4x128xf32> -> vector<4x128xf32>
    %129 = arith.addf %127, %128 : vector<4x128xf32>
    %130 = vector.extract_strided_slice %129 {offsets = [0, 0], sizes = [4, 32], strides = [1, 1]} : vector<4x128xf32> to vector<4x32xf32>
    %131 = arith.negf %130 : vector<4x32xf32>
    %132 = math.exp %131 : vector<4x32xf32>
    %cst_35 = arith.constant 1.000000e+00 : f32
    %133 = vector.broadcast %cst_35 : f32 to vector<4x32xf32>
    %134 = arith.addf %133, %132 : vector<4x32xf32>
    %135 = arith.divf %133, %134 : vector<4x32xf32>
    %136 = vector.extract_strided_slice %129 {offsets = [0, 32], sizes = [4, 32], strides = [1, 1]} : vector<4x128xf32> to vector<4x32xf32>
    %137 = arith.negf %136 : vector<4x32xf32>
    %138 = math.exp %137 : vector<4x32xf32>
    %cst_36 = arith.constant 1.000000e+00 : f32
    %139 = vector.broadcast %cst_36 : f32 to vector<4x32xf32>
    %140 = arith.addf %139, %138 : vector<4x32xf32>
    %141 = arith.divf %139, %140 : vector<4x32xf32>
    %142 = vector.extract_strided_slice %129 {offsets = [0, 64], sizes = [4, 32], strides = [1, 1]} : vector<4x128xf32> to vector<4x32xf32>
    %143 = math.tanh %142 : vector<4x32xf32>
    %144 = vector.extract_strided_slice %129 {offsets = [0, 96], sizes = [4, 32], strides = [1, 1]} : vector<4x128xf32> to vector<4x32xf32>
    %145 = arith.negf %144 : vector<4x32xf32>
    %146 = math.exp %145 : vector<4x32xf32>
    %cst_37 = arith.constant 1.000000e+00 : f32
    %147 = vector.broadcast %cst_37 : f32 to vector<4x32xf32>
    %148 = arith.addf %147, %146 : vector<4x32xf32>
    %149 = arith.divf %147, %148 : vector<4x32xf32>
    %150 = arith.mulf %141, %123 : vector<4x32xf32>
    %151 = arith.mulf %135, %143 : vector<4x32xf32>
    %152 = arith.addf %150, %151 : vector<4x32xf32>
    %153 = math.tanh %152 : vector<4x32xf32>
    %154 = arith.mulf %149, %153 : vector<4x32xf32>
    %c16 = arith.constant 16 : index
    %c0_38 = arith.constant 0 : index
    %155 = vector.load %arg14[%c16, %c0_38] : memref<32x32xf32, #tpu.memory_space<vmem>>, vector<4x32xf32>
    tpu.vector_store %arg14[%c16, %c0_38], %154 {strides = array<i32>} : memref<32x32xf32, #tpu.memory_space<vmem>>, vector<4x32xf32>,
    %156 = vector.extract_strided_slice %6 {offsets = [20, 0], sizes = [4, 128], strides = [1, 1]} : vector<32x128xf32> to vector<4x128xf32>
    %cst_39 = arith.constant dense<0.000000e+00> : vector<4x128xf32>
    %157 = tpu.matmul %154, %2, %cst_39 {dimension_numbers = #tpu.dot_dimension_numbers<[1], [0], [0], [1], [0, 0, 1, 1], [], []>} : vector<4x32xf32>, vector<32x128xf32>, vector<4x128xf32> -> vector<4x128xf32>
    %158 = arith.addf %156, %157 : vector<4x128xf32>
    %159 = vector.extract_strided_slice %158 {offsets = [0, 0], sizes = [4, 32], strides = [1, 1]} : vector<4x128xf32> to vector<4x32xf32>
    %160 = arith.negf %159 : vector<4x32xf32>
    %161 = math.exp %160 : vector<4x32xf32>
    %cst_40 = arith.constant 1.000000e+00 : f32
    %162 = vector.broadcast %cst_40 : f32 to vector<4x32xf32>
    %163 = arith.addf %162, %161 : vector<4x32xf32>
    %164 = arith.divf %162, %163 : vector<4x32xf32>
    %165 = vector.extract_strided_slice %158 {offsets = [0, 32], sizes = [4, 32], strides = [1, 1]} : vector<4x128xf32> to vector<4x32xf32>
    %166 = arith.negf %165 : vector<4x32xf32>
    %167 = math.exp %166 : vector<4x32xf32>
    %cst_41 = arith.constant 1.000000e+00 : f32
    %168 = vector.broadcast %cst_41 : f32 to vector<4x32xf32>
    %169 = arith.addf %168, %167 : vector<4x32xf32>
    %170 = arith.divf %168, %169 : vector<4x32xf32>
    %171 = vector.extract_strided_slice %158 {offsets = [0, 64], sizes = [4, 32], strides = [1, 1]} : vector<4x128xf32> to vector<4x32xf32>
    %172 = math.tanh %171 : vector<4x32xf32>
    %173 = vector.extract_strided_slice %158 {offsets = [0, 96], sizes = [4, 32], strides = [1, 1]} : vector<4x128xf32> to vector<4x32xf32>
    %174 = arith.negf %173 : vector<4x32xf32>
    %175 = math.exp %174 : vector<4x32xf32>
    %cst_42 = arith.constant 1.000000e+00 : f32
    %176 = vector.broadcast %cst_42 : f32 to vector<4x32xf32>
    %177 = arith.addf %176, %175 : vector<4x32xf32>
    %178 = arith.divf %176, %177 : vector<4x32xf32>
    %179 = arith.mulf %170, %152 : vector<4x32xf32>
    %180 = arith.mulf %164, %172 : vector<4x32xf32>
    %181 = arith.addf %179, %180 : vector<4x32xf32>
    %182 = math.tanh %181 : vector<4x32xf32>
    %183 = arith.mulf %178, %182 : vector<4x32xf32>
    %c20 = arith.constant 20 : index
    %c0_43 = arith.constant 0 : index
    %184 = vector.load %arg14[%c20, %c0_43] : memref<32x32xf32, #tpu.memory_space<vmem>>, vector<4x32xf32>
    tpu.vector_store %arg14[%c20, %c0_43], %183 {strides = array<i32>} : memref<32x32xf32, #tpu.memory_space<vmem>>, vector<4x32xf32>,
    %185 = vector.extract_strided_slice %6 {offsets = [24, 0], sizes = [4, 128], strides = [1, 1]} : vector<32x128xf32> to vector<4x128xf32>
    %cst_44 = arith.constant dense<0.000000e+00> : vector<4x128xf32>
    %186 = tpu.matmul %183, %2, %cst_44 {dimension_numbers = #tpu.dot_dimension_numbers<[1], [0], [0], [1], [0, 0, 1, 1], [], []>} : vector<4x32xf32>, vector<32x128xf32>, vector<4x128xf32> -> vector<4x128xf32>
    %187 = arith.addf %185, %186 : vector<4x128xf32>
    %188 = vector.extract_strided_slice %187 {offsets = [0, 0], sizes = [4, 32], strides = [1, 1]} : vector<4x128xf32> to vector<4x32xf32>
    %189 = arith.negf %188 : vector<4x32xf32>
    %190 = math.exp %189 : vector<4x32xf32>
    %cst_45 = arith.constant 1.000000e+00 : f32
    %191 = vector.broadcast %cst_45 : f32 to vector<4x32xf32>
    %192 = arith.addf %191, %190 : vector<4x32xf32>
    %193 = arith.divf %191, %192 : vector<4x32xf32>
    %194 = vector.extract_strided_slice %187 {offsets = [0, 32], sizes = [4, 32], strides = [1, 1]} : vector<4x128xf32> to vector<4x32xf32>
    %195 = arith.negf %194 : vector<4x32xf32>
    %196 = math.exp %195 : vector<4x32xf32>
    %cst_46 = arith.constant 1.000000e+00 : f32
    %197 = vector.broadcast %cst_46 : f32 to vector<4x32xf32>
    %198 = arith.addf %197, %196 : vector<4x32xf32>
    %199 = arith.divf %197, %198 : vector<4x32xf32>
    %200 = vector.extract_strided_slice %187 {offsets = [0, 64], sizes = [4, 32], strides = [1, 1]} : vector<4x128xf32> to vector<4x32xf32>
    %201 = math.tanh %200 : vector<4x32xf32>
    %202 = vector.extract_strided_slice %187 {offsets = [0, 96], sizes = [4, 32], strides = [1, 1]} : vector<4x128xf32> to vector<4x32xf32>
    %203 = arith.negf %202 : vector<4x32xf32>
    %204 = math.exp %203 : vector<4x32xf32>
    %cst_47 = arith.constant 1.000000e+00 : f32
    %205 = vector.broadcast %cst_47 : f32 to vector<4x32xf32>
    %206 = arith.addf %205, %204 : vector<4x32xf32>
    %207 = arith.divf %205, %206 : vector<4x32xf32>
    %208 = arith.mulf %199, %181 : vector<4x32xf32>
    %209 = arith.mulf %193, %201 : vector<4x32xf32>
    %210 = arith.addf %208, %209 : vector<4x32xf32>
    %211 = math.tanh %210 : vector<4x32xf32>
    %212 = arith.mulf %207, %211 : vector<4x32xf32>
    %c24 = arith.constant 24 : index
    %c0_48 = arith.constant 0 : index
    %213 = vector.load %arg14[%c24, %c0_48] : memref<32x32xf32, #tpu.memory_space<vmem>>, vector<4x32xf32>
    tpu.vector_store %arg14[%c24, %c0_48], %212 {strides = array<i32>} : memref<32x32xf32, #tpu.memory_space<vmem>>, vector<4x32xf32>,
    %214 = vector.extract_strided_slice %6 {offsets = [28, 0], sizes = [4, 128], strides = [1, 1]} : vector<32x128xf32> to vector<4x128xf32>
    %cst_49 = arith.constant dense<0.000000e+00> : vector<4x128xf32>
    %215 = tpu.matmul %212, %2, %cst_49 {dimension_numbers = #tpu.dot_dimension_numbers<[1], [0], [0], [1], [0, 0, 1, 1], [], []>} : vector<4x32xf32>, vector<32x128xf32>, vector<4x128xf32> -> vector<4x128xf32>
    %216 = arith.addf %214, %215 : vector<4x128xf32>
    %217 = vector.extract_strided_slice %216 {offsets = [0, 0], sizes = [4, 32], strides = [1, 1]} : vector<4x128xf32> to vector<4x32xf32>
    %218 = arith.negf %217 : vector<4x32xf32>
    %219 = math.exp %218 : vector<4x32xf32>
    %cst_50 = arith.constant 1.000000e+00 : f32
    %220 = vector.broadcast %cst_50 : f32 to vector<4x32xf32>
    %221 = arith.addf %220, %219 : vector<4x32xf32>
    %222 = arith.divf %220, %221 : vector<4x32xf32>
    %223 = vector.extract_strided_slice %216 {offsets = [0, 32], sizes = [4, 32], strides = [1, 1]} : vector<4x128xf32> to vector<4x32xf32>
    %224 = arith.negf %223 : vector<4x32xf32>
    %225 = math.exp %224 : vector<4x32xf32>
    %cst_51 = arith.constant 1.000000e+00 : f32
    %226 = vector.broadcast %cst_51 : f32 to vector<4x32xf32>
    %227 = arith.addf %226, %225 : vector<4x32xf32>
    %228 = arith.divf %226, %227 : vector<4x32xf32>
    %229 = vector.extract_strided_slice %216 {offsets = [0, 64], sizes = [4, 32], strides = [1, 1]} : vector<4x128xf32> to vector<4x32xf32>
    %230 = math.tanh %229 : vector<4x32xf32>
    %231 = vector.extract_strided_slice %216 {offsets = [0, 96], sizes = [4, 32], strides = [1, 1]} : vector<4x128xf32> to vector<4x32xf32>
    %232 = arith.negf %231 : vector<4x32xf32>
    %233 = math.exp %232 : vector<4x32xf32>
    %cst_52 = arith.constant 1.000000e+00 : f32
    %234 = vector.broadcast %cst_52 : f32 to vector<4x32xf32>
    %235 = arith.addf %234, %233 : vector<4x32xf32>
    %236 = arith.divf %234, %235 : vector<4x32xf32>
    %237 = arith.mulf %228, %210 : vector<4x32xf32>
    %238 = arith.mulf %222, %230 : vector<4x32xf32>
    %239 = arith.addf %237, %238 : vector<4x32xf32>
    %240 = math.tanh %239 : vector<4x32xf32>
    %241 = arith.mulf %236, %240 : vector<4x32xf32>
    %c28 = arith.constant 28 : index
    %c0_53 = arith.constant 0 : index
    %242 = vector.load %arg14[%c28, %c0_53] : memref<32x32xf32, #tpu.memory_space<vmem>>, vector<4x32xf32>
    tpu.vector_store %arg14[%c28, %c0_53], %241 {strides = array<i32>} : memref<32x32xf32, #tpu.memory_space<vmem>>, vector<4x32xf32>,
    %c0_54 = arith.constant 0 : index
    %c0_55 = arith.constant 0 : index
    %c0_56 = arith.constant 0 : index
    %243 = vector.load %arg12[%c0_54, %c0_55, %c0_56] : memref<2x4x32xf32, #tpu.memory_space<vmem>>, vector<1x4x32xf32>
    %244 = vector.shape_cast %243 : vector<1x4x32xf32> to vector<4x32xf32>
    %245 = vector.shape_cast %241 : vector<4x32xf32> to vector<1x4x32xf32>
    tpu.vector_store %arg12[%c0_54, %c0_55, %c0_56], %245 {strides = array<i32>} : memref<2x4x32xf32, #tpu.memory_space<vmem>>, vector<1x4x32xf32>,
    %c0_57 = arith.constant 0 : index
    %c0_58 = arith.constant 0 : index
    %c0_59 = arith.constant 0 : index
    %246 = vector.load %arg13[%c0_57, %c0_58, %c0_59] : memref<2x4x32xf32, #tpu.memory_space<vmem>>, vector<1x4x32xf32>
    %247 = vector.shape_cast %246 : vector<1x4x32xf32> to vector<4x32xf32>
    %248 = vector.shape_cast %239 : vector<4x32xf32> to vector<1x4x32xf32>
    tpu.vector_store %arg13[%c0_57, %c0_58, %c0_59], %248 {strides = array<i32>} : memref<2x4x32xf32, #tpu.memory_space<vmem>>, vector<1x4x32xf32>,
    %c0_60 = arith.constant 0 : index
    %c0_61 = arith.constant 0 : index
    %249 = vector.load %arg14[%c0_60, %c0_61] : memref<32x32xf32, #tpu.memory_space<vmem>>, vector<32x32xf32>
    %c0_62 = arith.constant 0 : index
    %c0_63 = arith.constant 0 : index
    %250 = vector.load %arg4[%c0_62, %c0_63] : memref<32x128xf32, #tpu.memory_space<vmem>>, vector<32x128xf32>
    %c0_64 = arith.constant 0 : index
    %c0_65 = arith.constant 0 : index
    %251 = vector.load %arg5[%c0_64, %c0_65] : memref<32x128xf32, #tpu.memory_space<vmem>>, vector<32x128xf32>
    %c0_66 = arith.constant 0 : index
    %c0_67 = arith.constant 0 : index
    %252 = vector.load %arg6[%c0_66, %c0_67] : memref<1x128xf32, #tpu.memory_space<vmem>>, vector<1x128xf32>
    %cst_68 = arith.constant dense<0.000000e+00> : vector<32x128xf32>
    %253 = tpu.matmul %249, %250, %cst_68 {dimension_numbers = #tpu.dot_dimension_numbers<[1], [0], [0], [1], [0, 0, 1, 1], [], []>} : vector<32x32xf32>, vector<32x128xf32>, vector<32x128xf32> -> vector<32x128xf32>
    %254 = vector.broadcast %252 : vector<1x128xf32> to vector<32x128xf32>
    %255 = arith.addf %253, %254 : vector<32x128xf32>
    %c1 = arith.constant 1 : index
    %c0_69 = arith.constant 0 : index
    %c0_70 = arith.constant 0 : index
    %256 = vector.load %arg9[%c1, %c0_69, %c0_70] : memref<2x4x32xf32, #tpu.memory_space<vmem>>, vector<1x4x32xf32>
    %257 = vector.shape_cast %256 : vector<1x4x32xf32> to vector<4x32xf32>
    %c1_71 = arith.constant 1 : index
    %c0_72 = arith.constant 0 : index
    %c0_73 = arith.constant 0 : index
    %258 = vector.load %arg10[%c1_71, %c0_72, %c0_73] : memref<2x4x32xf32, #tpu.memory_space<vmem>>, vector<1x4x32xf32>
    %259 = vector.shape_cast %258 : vector<1x4x32xf32> to vector<4x32xf32>
    %260 = vector.extract_strided_slice %255 {offsets = [0, 0], sizes = [4, 128], strides = [1, 1]} : vector<32x128xf32> to vector<4x128xf32>
    %cst_74 = arith.constant dense<0.000000e+00> : vector<4x128xf32>
    %261 = tpu.matmul %257, %251, %cst_74 {dimension_numbers = #tpu.dot_dimension_numbers<[1], [0], [0], [1], [0, 0, 1, 1], [], []>} : vector<4x32xf32>, vector<32x128xf32>, vector<4x128xf32> -> vector<4x128xf32>
    %262 = arith.addf %260, %261 : vector<4x128xf32>
    %263 = vector.extract_strided_slice %262 {offsets = [0, 0], sizes = [4, 32], strides = [1, 1]} : vector<4x128xf32> to vector<4x32xf32>
    %264 = arith.negf %263 : vector<4x32xf32>
    %265 = math.exp %264 : vector<4x32xf32>
    %cst_75 = arith.constant 1.000000e+00 : f32
    %266 = vector.broadcast %cst_75 : f32 to vector<4x32xf32>
    %267 = arith.addf %266, %265 : vector<4x32xf32>
    %268 = arith.divf %266, %267 : vector<4x32xf32>
    %269 = vector.extract_strided_slice %262 {offsets = [0, 32], sizes = [4, 32], strides = [1, 1]} : vector<4x128xf32> to vector<4x32xf32>
    %270 = arith.negf %269 : vector<4x32xf32>
    %271 = math.exp %270 : vector<4x32xf32>
    %cst_76 = arith.constant 1.000000e+00 : f32
    %272 = vector.broadcast %cst_76 : f32 to vector<4x32xf32>
    %273 = arith.addf %272, %271 : vector<4x32xf32>
    %274 = arith.divf %272, %273 : vector<4x32xf32>
    %275 = vector.extract_strided_slice %262 {offsets = [0, 64], sizes = [4, 32], strides = [1, 1]} : vector<4x128xf32> to vector<4x32xf32>
    %276 = math.tanh %275 : vector<4x32xf32>
    %277 = vector.extract_strided_slice %262 {offsets = [0, 96], sizes = [4, 32], strides = [1, 1]} : vector<4x128xf32> to vector<4x32xf32>
    %278 = arith.negf %277 : vector<4x32xf32>
    %279 = math.exp %278 : vector<4x32xf32>
    %cst_77 = arith.constant 1.000000e+00 : f32
    %280 = vector.broadcast %cst_77 : f32 to vector<4x32xf32>
    %281 = arith.addf %280, %279 : vector<4x32xf32>
    %282 = arith.divf %280, %281 : vector<4x32xf32>
    %283 = arith.mulf %274, %259 : vector<4x32xf32>
    %284 = arith.mulf %268, %276 : vector<4x32xf32>
    %285 = arith.addf %283, %284 : vector<4x32xf32>
    %286 = math.tanh %285 : vector<4x32xf32>
    %287 = arith.mulf %282, %286 : vector<4x32xf32>
    %c0_78 = arith.constant 0 : index
    %c0_79 = arith.constant 0 : index
    %288 = vector.load %arg14[%c0_78, %c0_79] : memref<32x32xf32, #tpu.memory_space<vmem>>, vector<4x32xf32>
    tpu.vector_store %arg14[%c0_78, %c0_79], %287 {strides = array<i32>} : memref<32x32xf32, #tpu.memory_space<vmem>>, vector<4x32xf32>,
    %289 = vector.extract_strided_slice %255 {offsets = [4, 0], sizes = [4, 128], strides = [1, 1]} : vector<32x128xf32> to vector<4x128xf32>
    %cst_80 = arith.constant dense<0.000000e+00> : vector<4x128xf32>
    %290 = tpu.matmul %287, %251, %cst_80 {dimension_numbers = #tpu.dot_dimension_numbers<[1], [0], [0], [1], [0, 0, 1, 1], [], []>} : vector<4x32xf32>, vector<32x128xf32>, vector<4x128xf32> -> vector<4x128xf32>
    %291 = arith.addf %289, %290 : vector<4x128xf32>
    %292 = vector.extract_strided_slice %291 {offsets = [0, 0], sizes = [4, 32], strides = [1, 1]} : vector<4x128xf32> to vector<4x32xf32>
    %293 = arith.negf %292 : vector<4x32xf32>
    %294 = math.exp %293 : vector<4x32xf32>
    %cst_81 = arith.constant 1.000000e+00 : f32
    %295 = vector.broadcast %cst_81 : f32 to vector<4x32xf32>
    %296 = arith.addf %295, %294 : vector<4x32xf32>
    %297 = arith.divf %295, %296 : vector<4x32xf32>
    %298 = vector.extract_strided_slice %291 {offsets = [0, 32], sizes = [4, 32], strides = [1, 1]} : vector<4x128xf32> to vector<4x32xf32>
    %299 = arith.negf %298 : vector<4x32xf32>
    %300 = math.exp %299 : vector<4x32xf32>
    %cst_82 = arith.constant 1.000000e+00 : f32
    %301 = vector.broadcast %cst_82 : f32 to vector<4x32xf32>
    %302 = arith.addf %301, %300 : vector<4x32xf32>
    %303 = arith.divf %301, %302 : vector<4x32xf32>
    %304 = vector.extract_strided_slice %291 {offsets = [0, 64], sizes = [4, 32], strides = [1, 1]} : vector<4x128xf32> to vector<4x32xf32>
    %305 = math.tanh %304 : vector<4x32xf32>
    %306 = vector.extract_strided_slice %291 {offsets = [0, 96], sizes = [4, 32], strides = [1, 1]} : vector<4x128xf32> to vector<4x32xf32>
    %307 = arith.negf %306 : vector<4x32xf32>
    %308 = math.exp %307 : vector<4x32xf32>
    %cst_83 = arith.constant 1.000000e+00 : f32
    %309 = vector.broadcast %cst_83 : f32 to vector<4x32xf32>
    %310 = arith.addf %309, %308 : vector<4x32xf32>
    %311 = arith.divf %309, %310 : vector<4x32xf32>
    %312 = arith.mulf %303, %285 : vector<4x32xf32>
    %313 = arith.mulf %297, %305 : vector<4x32xf32>
    %314 = arith.addf %312, %313 : vector<4x32xf32>
    %315 = math.tanh %314 : vector<4x32xf32>
    %316 = arith.mulf %311, %315 : vector<4x32xf32>
    %c4_84 = arith.constant 4 : index
    %c0_85 = arith.constant 0 : index
    %317 = vector.load %arg14[%c4_84, %c0_85] : memref<32x32xf32, #tpu.memory_space<vmem>>, vector<4x32xf32>
    tpu.vector_store %arg14[%c4_84, %c0_85], %316 {strides = array<i32>} : memref<32x32xf32, #tpu.memory_space<vmem>>, vector<4x32xf32>,
    %318 = vector.extract_strided_slice %255 {offsets = [8, 0], sizes = [4, 128], strides = [1, 1]} : vector<32x128xf32> to vector<4x128xf32>
    %cst_86 = arith.constant dense<0.000000e+00> : vector<4x128xf32>
    %319 = tpu.matmul %316, %251, %cst_86 {dimension_numbers = #tpu.dot_dimension_numbers<[1], [0], [0], [1], [0, 0, 1, 1], [], []>} : vector<4x32xf32>, vector<32x128xf32>, vector<4x128xf32> -> vector<4x128xf32>
    %320 = arith.addf %318, %319 : vector<4x128xf32>
    %321 = vector.extract_strided_slice %320 {offsets = [0, 0], sizes = [4, 32], strides = [1, 1]} : vector<4x128xf32> to vector<4x32xf32>
    %322 = arith.negf %321 : vector<4x32xf32>
    %323 = math.exp %322 : vector<4x32xf32>
    %cst_87 = arith.constant 1.000000e+00 : f32
    %324 = vector.broadcast %cst_87 : f32 to vector<4x32xf32>
    %325 = arith.addf %324, %323 : vector<4x32xf32>
    %326 = arith.divf %324, %325 : vector<4x32xf32>
    %327 = vector.extract_strided_slice %320 {offsets = [0, 32], sizes = [4, 32], strides = [1, 1]} : vector<4x128xf32> to vector<4x32xf32>
    %328 = arith.negf %327 : vector<4x32xf32>
    %329 = math.exp %328 : vector<4x32xf32>
    %cst_88 = arith.constant 1.000000e+00 : f32
    %330 = vector.broadcast %cst_88 : f32 to vector<4x32xf32>
    %331 = arith.addf %330, %329 : vector<4x32xf32>
    %332 = arith.divf %330, %331 : vector<4x32xf32>
    %333 = vector.extract_strided_slice %320 {offsets = [0, 64], sizes = [4, 32], strides = [1, 1]} : vector<4x128xf32> to vector<4x32xf32>
    %334 = math.tanh %333 : vector<4x32xf32>
    %335 = vector.extract_strided_slice %320 {offsets = [0, 96], sizes = [4, 32], strides = [1, 1]} : vector<4x128xf32> to vector<4x32xf32>
    %336 = arith.negf %335 : vector<4x32xf32>
    %337 = math.exp %336 : vector<4x32xf32>
    %cst_89 = arith.constant 1.000000e+00 : f32
    %338 = vector.broadcast %cst_89 : f32 to vector<4x32xf32>
    %339 = arith.addf %338, %337 : vector<4x32xf32>
    %340 = arith.divf %338, %339 : vector<4x32xf32>
    %341 = arith.mulf %332, %314 : vector<4x32xf32>
    %342 = arith.mulf %326, %334 : vector<4x32xf32>
    %343 = arith.addf %341, %342 : vector<4x32xf32>
    %344 = math.tanh %343 : vector<4x32xf32>
    %345 = arith.mulf %340, %344 : vector<4x32xf32>
    %c8_90 = arith.constant 8 : index
    %c0_91 = arith.constant 0 : index
    %346 = vector.load %arg14[%c8_90, %c0_91] : memref<32x32xf32, #tpu.memory_space<vmem>>, vector<4x32xf32>
    tpu.vector_store %arg14[%c8_90, %c0_91], %345 {strides = array<i32>} : memref<32x32xf32, #tpu.memory_space<vmem>>, vector<4x32xf32>,
    %347 = vector.extract_strided_slice %255 {offsets = [12, 0], sizes = [4, 128], strides = [1, 1]} : vector<32x128xf32> to vector<4x128xf32>
    %cst_92 = arith.constant dense<0.000000e+00> : vector<4x128xf32>
    %348 = tpu.matmul %345, %251, %cst_92 {dimension_numbers = #tpu.dot_dimension_numbers<[1], [0], [0], [1], [0, 0, 1, 1], [], []>} : vector<4x32xf32>, vector<32x128xf32>, vector<4x128xf32> -> vector<4x128xf32>
    %349 = arith.addf %347, %348 : vector<4x128xf32>
    %350 = vector.extract_strided_slice %349 {offsets = [0, 0], sizes = [4, 32], strides = [1, 1]} : vector<4x128xf32> to vector<4x32xf32>
    %351 = arith.negf %350 : vector<4x32xf32>
    %352 = math.exp %351 : vector<4x32xf32>
    %cst_93 = arith.constant 1.000000e+00 : f32
    %353 = vector.broadcast %cst_93 : f32 to vector<4x32xf32>
    %354 = arith.addf %353, %352 : vector<4x32xf32>
    %355 = arith.divf %353, %354 : vector<4x32xf32>
    %356 = vector.extract_strided_slice %349 {offsets = [0, 32], sizes = [4, 32], strides = [1, 1]} : vector<4x128xf32> to vector<4x32xf32>
    %357 = arith.negf %356 : vector<4x32xf32>
    %358 = math.exp %357 : vector<4x32xf32>
    %cst_94 = arith.constant 1.000000e+00 : f32
    %359 = vector.broadcast %cst_94 : f32 to vector<4x32xf32>
    %360 = arith.addf %359, %358 : vector<4x32xf32>
    %361 = arith.divf %359, %360 : vector<4x32xf32>
    %362 = vector.extract_strided_slice %349 {offsets = [0, 64], sizes = [4, 32], strides = [1, 1]} : vector<4x128xf32> to vector<4x32xf32>
    %363 = math.tanh %362 : vector<4x32xf32>
    %364 = vector.extract_strided_slice %349 {offsets = [0, 96], sizes = [4, 32], strides = [1, 1]} : vector<4x128xf32> to vector<4x32xf32>
    %365 = arith.negf %364 : vector<4x32xf32>
    %366 = math.exp %365 : vector<4x32xf32>
    %cst_95 = arith.constant 1.000000e+00 : f32
    %367 = vector.broadcast %cst_95 : f32 to vector<4x32xf32>
    %368 = arith.addf %367, %366 : vector<4x32xf32>
    %369 = arith.divf %367, %368 : vector<4x32xf32>
    %370 = arith.mulf %361, %343 : vector<4x32xf32>
    %371 = arith.mulf %355, %363 : vector<4x32xf32>
    %372 = arith.addf %370, %371 : vector<4x32xf32>
    %373 = math.tanh %372 : vector<4x32xf32>
    %374 = arith.mulf %369, %373 : vector<4x32xf32>
    %c12_96 = arith.constant 12 : index
    %c0_97 = arith.constant 0 : index
    %375 = vector.load %arg14[%c12_96, %c0_97] : memref<32x32xf32, #tpu.memory_space<vmem>>, vector<4x32xf32>
    tpu.vector_store %arg14[%c12_96, %c0_97], %374 {strides = array<i32>} : memref<32x32xf32, #tpu.memory_space<vmem>>, vector<4x32xf32>,
    %376 = vector.extract_strided_slice %255 {offsets = [16, 0], sizes = [4, 128], strides = [1, 1]} : vector<32x128xf32> to vector<4x128xf32>
    %cst_98 = arith.constant dense<0.000000e+00> : vector<4x128xf32>
    %377 = tpu.matmul %374, %251, %cst_98 {dimension_numbers = #tpu.dot_dimension_numbers<[1], [0], [0], [1], [0, 0, 1, 1], [], []>} : vector<4x32xf32>, vector<32x128xf32>, vector<4x128xf32> -> vector<4x128xf32>
    %378 = arith.addf %376, %377 : vector<4x128xf32>
    %379 = vector.extract_strided_slice %378 {offsets = [0, 0], sizes = [4, 32], strides = [1, 1]} : vector<4x128xf32> to vector<4x32xf32>
    %380 = arith.negf %379 : vector<4x32xf32>
    %381 = math.exp %380 : vector<4x32xf32>
    %cst_99 = arith.constant 1.000000e+00 : f32
    %382 = vector.broadcast %cst_99 : f32 to vector<4x32xf32>
    %383 = arith.addf %382, %381 : vector<4x32xf32>
    %384 = arith.divf %382, %383 : vector<4x32xf32>
    %385 = vector.extract_strided_slice %378 {offsets = [0, 32], sizes = [4, 32], strides = [1, 1]} : vector<4x128xf32> to vector<4x32xf32>
    %386 = arith.negf %385 : vector<4x32xf32>
    %387 = math.exp %386 : vector<4x32xf32>
    %cst_100 = arith.constant 1.000000e+00 : f32
    %388 = vector.broadcast %cst_100 : f32 to vector<4x32xf32>
    %389 = arith.addf %388, %387 : vector<4x32xf32>
    %390 = arith.divf %388, %389 : vector<4x32xf32>
    %391 = vector.extract_strided_slice %378 {offsets = [0, 64], sizes = [4, 32], strides = [1, 1]} : vector<4x128xf32> to vector<4x32xf32>
    %392 = math.tanh %391 : vector<4x32xf32>
    %393 = vector.extract_strided_slice %378 {offsets = [0, 96], sizes = [4, 32], strides = [1, 1]} : vector<4x128xf32> to vector<4x32xf32>
    %394 = arith.negf %393 : vector<4x32xf32>
    %395 = math.exp %394 : vector<4x32xf32>
    %cst_101 = arith.constant 1.000000e+00 : f32
    %396 = vector.broadcast %cst_101 : f32 to vector<4x32xf32>
    %397 = arith.addf %396, %395 : vector<4x32xf32>
    %398 = arith.divf %396, %397 : vector<4x32xf32>
    %399 = arith.mulf %390, %372 : vector<4x32xf32>
    %400 = arith.mulf %384, %392 : vector<4x32xf32>
    %401 = arith.addf %399, %400 : vector<4x32xf32>
    %402 = math.tanh %401 : vector<4x32xf32>
    %403 = arith.mulf %398, %402 : vector<4x32xf32>
    %c16_102 = arith.constant 16 : index
    %c0_103 = arith.constant 0 : index
    %404 = vector.load %arg14[%c16_102, %c0_103] : memref<32x32xf32, #tpu.memory_space<vmem>>, vector<4x32xf32>
    tpu.vector_store %arg14[%c16_102, %c0_103], %403 {strides = array<i32>} : memref<32x32xf32, #tpu.memory_space<vmem>>, vector<4x32xf32>,
    %405 = vector.extract_strided_slice %255 {offsets = [20, 0], sizes = [4, 128], strides = [1, 1]} : vector<32x128xf32> to vector<4x128xf32>
    %cst_104 = arith.constant dense<0.000000e+00> : vector<4x128xf32>
    %406 = tpu.matmul %403, %251, %cst_104 {dimension_numbers = #tpu.dot_dimension_numbers<[1], [0], [0], [1], [0, 0, 1, 1], [], []>} : vector<4x32xf32>, vector<32x128xf32>, vector<4x128xf32> -> vector<4x128xf32>
    %407 = arith.addf %405, %406 : vector<4x128xf32>
    %408 = vector.extract_strided_slice %407 {offsets = [0, 0], sizes = [4, 32], strides = [1, 1]} : vector<4x128xf32> to vector<4x32xf32>
    %409 = arith.negf %408 : vector<4x32xf32>
    %410 = math.exp %409 : vector<4x32xf32>
    %cst_105 = arith.constant 1.000000e+00 : f32
    %411 = vector.broadcast %cst_105 : f32 to vector<4x32xf32>
    %412 = arith.addf %411, %410 : vector<4x32xf32>
    %413 = arith.divf %411, %412 : vector<4x32xf32>
    %414 = vector.extract_strided_slice %407 {offsets = [0, 32], sizes = [4, 32], strides = [1, 1]} : vector<4x128xf32> to vector<4x32xf32>
    %415 = arith.negf %414 : vector<4x32xf32>
    %416 = math.exp %415 : vector<4x32xf32>
    %cst_106 = arith.constant 1.000000e+00 : f32
    %417 = vector.broadcast %cst_106 : f32 to vector<4x32xf32>
    %418 = arith.addf %417, %416 : vector<4x32xf32>
    %419 = arith.divf %417, %418 : vector<4x32xf32>
    %420 = vector.extract_strided_slice %407 {offsets = [0, 64], sizes = [4, 32], strides = [1, 1]} : vector<4x128xf32> to vector<4x32xf32>
    %421 = math.tanh %420 : vector<4x32xf32>
    %422 = vector.extract_strided_slice %407 {offsets = [0, 96], sizes = [4, 32], strides = [1, 1]} : vector<4x128xf32> to vector<4x32xf32>
    %423 = arith.negf %422 : vector<4x32xf32>
    %424 = math.exp %423 : vector<4x32xf32>
    %cst_107 = arith.constant 1.000000e+00 : f32
    %425 = vector.broadcast %cst_107 : f32 to vector<4x32xf32>
    %426 = arith.addf %425, %424 : vector<4x32xf32>
    %427 = arith.divf %425, %426 : vector<4x32xf32>
    %428 = arith.mulf %419, %401 : vector<4x32xf32>
    %429 = arith.mulf %413, %421 : vector<4x32xf32>
    %430 = arith.addf %428, %429 : vector<4x32xf32>
    %431 = math.tanh %430 : vector<4x32xf32>
    %432 = arith.mulf %427, %431 : vector<4x32xf32>
    %c20_108 = arith.constant 20 : index
    %c0_109 = arith.constant 0 : index
    %433 = vector.load %arg14[%c20_108, %c0_109] : memref<32x32xf32, #tpu.memory_space<vmem>>, vector<4x32xf32>
    tpu.vector_store %arg14[%c20_108, %c0_109], %432 {strides = array<i32>} : memref<32x32xf32, #tpu.memory_space<vmem>>, vector<4x32xf32>,
    %434 = vector.extract_strided_slice %255 {offsets = [24, 0], sizes = [4, 128], strides = [1, 1]} : vector<32x128xf32> to vector<4x128xf32>
    %cst_110 = arith.constant dense<0.000000e+00> : vector<4x128xf32>
    %435 = tpu.matmul %432, %251, %cst_110 {dimension_numbers = #tpu.dot_dimension_numbers<[1], [0], [0], [1], [0, 0, 1, 1], [], []>} : vector<4x32xf32>, vector<32x128xf32>, vector<4x128xf32> -> vector<4x128xf32>
    %436 = arith.addf %434, %435 : vector<4x128xf32>
    %437 = vector.extract_strided_slice %436 {offsets = [0, 0], sizes = [4, 32], strides = [1, 1]} : vector<4x128xf32> to vector<4x32xf32>
    %438 = arith.negf %437 : vector<4x32xf32>
    %439 = math.exp %438 : vector<4x32xf32>
    %cst_111 = arith.constant 1.000000e+00 : f32
    %440 = vector.broadcast %cst_111 : f32 to vector<4x32xf32>
    %441 = arith.addf %440, %439 : vector<4x32xf32>
    %442 = arith.divf %440, %441 : vector<4x32xf32>
    %443 = vector.extract_strided_slice %436 {offsets = [0, 32], sizes = [4, 32], strides = [1, 1]} : vector<4x128xf32> to vector<4x32xf32>
    %444 = arith.negf %443 : vector<4x32xf32>
    %445 = math.exp %444 : vector<4x32xf32>
    %cst_112 = arith.constant 1.000000e+00 : f32
    %446 = vector.broadcast %cst_112 : f32 to vector<4x32xf32>
    %447 = arith.addf %446, %445 : vector<4x32xf32>
    %448 = arith.divf %446, %447 : vector<4x32xf32>
    %449 = vector.extract_strided_slice %436 {offsets = [0, 64], sizes = [4, 32], strides = [1, 1]} : vector<4x128xf32> to vector<4x32xf32>
    %450 = math.tanh %449 : vector<4x32xf32>
    %451 = vector.extract_strided_slice %436 {offsets = [0, 96], sizes = [4, 32], strides = [1, 1]} : vector<4x128xf32> to vector<4x32xf32>
    %452 = arith.negf %451 : vector<4x32xf32>
    %453 = math.exp %452 : vector<4x32xf32>
    %cst_113 = arith.constant 1.000000e+00 : f32
    %454 = vector.broadcast %cst_113 : f32 to vector<4x32xf32>
    %455 = arith.addf %454, %453 : vector<4x32xf32>
    %456 = arith.divf %454, %455 : vector<4x32xf32>
    %457 = arith.mulf %448, %430 : vector<4x32xf32>
    %458 = arith.mulf %442, %450 : vector<4x32xf32>
    %459 = arith.addf %457, %458 : vector<4x32xf32>
    %460 = math.tanh %459 : vector<4x32xf32>
    %461 = arith.mulf %456, %460 : vector<4x32xf32>
    %c24_114 = arith.constant 24 : index
    %c0_115 = arith.constant 0 : index
    %462 = vector.load %arg14[%c24_114, %c0_115] : memref<32x32xf32, #tpu.memory_space<vmem>>, vector<4x32xf32>
    tpu.vector_store %arg14[%c24_114, %c0_115], %461 {strides = array<i32>} : memref<32x32xf32, #tpu.memory_space<vmem>>, vector<4x32xf32>,
    %463 = vector.extract_strided_slice %255 {offsets = [28, 0], sizes = [4, 128], strides = [1, 1]} : vector<32x128xf32> to vector<4x128xf32>
    %cst_116 = arith.constant dense<0.000000e+00> : vector<4x128xf32>
    %464 = tpu.matmul %461, %251, %cst_116 {dimension_numbers = #tpu.dot_dimension_numbers<[1], [0], [0], [1], [0, 0, 1, 1], [], []>} : vector<4x32xf32>, vector<32x128xf32>, vector<4x128xf32> -> vector<4x128xf32>
    %465 = arith.addf %463, %464 : vector<4x128xf32>
    %466 = vector.extract_strided_slice %465 {offsets = [0, 0], sizes = [4, 32], strides = [1, 1]} : vector<4x128xf32> to vector<4x32xf32>
    %467 = arith.negf %466 : vector<4x32xf32>
    %468 = math.exp %467 : vector<4x32xf32>
    %cst_117 = arith.constant 1.000000e+00 : f32
    %469 = vector.broadcast %cst_117 : f32 to vector<4x32xf32>
    %470 = arith.addf %469, %468 : vector<4x32xf32>
    %471 = arith.divf %469, %470 : vector<4x32xf32>
    %472 = vector.extract_strided_slice %465 {offsets = [0, 32], sizes = [4, 32], strides = [1, 1]} : vector<4x128xf32> to vector<4x32xf32>
    %473 = arith.negf %472 : vector<4x32xf32>
    %474 = math.exp %473 : vector<4x32xf32>
    %cst_118 = arith.constant 1.000000e+00 : f32
    %475 = vector.broadcast %cst_118 : f32 to vector<4x32xf32>
    %476 = arith.addf %475, %474 : vector<4x32xf32>
    %477 = arith.divf %475, %476 : vector<4x32xf32>
    %478 = vector.extract_strided_slice %465 {offsets = [0, 64], sizes = [4, 32], strides = [1, 1]} : vector<4x128xf32> to vector<4x32xf32>
    %479 = math.tanh %478 : vector<4x32xf32>
    %480 = vector.extract_strided_slice %465 {offsets = [0, 96], sizes = [4, 32], strides = [1, 1]} : vector<4x128xf32> to vector<4x32xf32>
    %481 = arith.negf %480 : vector<4x32xf32>
    %482 = math.exp %481 : vector<4x32xf32>
    %cst_119 = arith.constant 1.000000e+00 : f32
    %483 = vector.broadcast %cst_119 : f32 to vector<4x32xf32>
    %484 = arith.addf %483, %482 : vector<4x32xf32>
    %485 = arith.divf %483, %484 : vector<4x32xf32>
    %486 = arith.mulf %477, %459 : vector<4x32xf32>
    %487 = arith.mulf %471, %479 : vector<4x32xf32>
    %488 = arith.addf %486, %487 : vector<4x32xf32>
    %489 = math.tanh %488 : vector<4x32xf32>
    %490 = arith.mulf %485, %489 : vector<4x32xf32>
    %c28_120 = arith.constant 28 : index
    %c0_121 = arith.constant 0 : index
    %491 = vector.load %arg14[%c28_120, %c0_121] : memref<32x32xf32, #tpu.memory_space<vmem>>, vector<4x32xf32>
    tpu.vector_store %arg14[%c28_120, %c0_121], %490 {strides = array<i32>} : memref<32x32xf32, #tpu.memory_space<vmem>>, vector<4x32xf32>,
    %c1_122 = arith.constant 1 : index
    %c0_123 = arith.constant 0 : index
    %c0_124 = arith.constant 0 : index
    %492 = vector.load %arg12[%c1_122, %c0_123, %c0_124] : memref<2x4x32xf32, #tpu.memory_space<vmem>>, vector<1x4x32xf32>
    %493 = vector.shape_cast %492 : vector<1x4x32xf32> to vector<4x32xf32>
    %494 = vector.shape_cast %490 : vector<4x32xf32> to vector<1x4x32xf32>
    tpu.vector_store %arg12[%c1_122, %c0_123, %c0_124], %494 {strides = array<i32>} : memref<2x4x32xf32, #tpu.memory_space<vmem>>, vector<1x4x32xf32>,
    %c1_125 = arith.constant 1 : index
    %c0_126 = arith.constant 0 : index
    %c0_127 = arith.constant 0 : index
    %495 = vector.load %arg13[%c1_125, %c0_126, %c0_127] : memref<2x4x32xf32, #tpu.memory_space<vmem>>, vector<1x4x32xf32>
    %496 = vector.shape_cast %495 : vector<1x4x32xf32> to vector<4x32xf32>
    %497 = vector.shape_cast %488 : vector<4x32xf32> to vector<1x4x32xf32>
    tpu.vector_store %arg13[%c1_125, %c0_126, %c0_127], %497 {strides = array<i32>} : memref<2x4x32xf32, #tpu.memory_space<vmem>>, vector<1x4x32xf32>,
    %c0_128 = arith.constant 0 : index
    %c0_129 = arith.constant 0 : index
    %498 = vector.load %arg14[%c0_128, %c0_129] : memref<32x32xf32, #tpu.memory_space<vmem>>, vector<32x32xf32>
    %c0_130 = arith.constant 0 : index
    %c0_131 = arith.constant 0 : index
    %499 = vector.load %arg7[%c0_130, %c0_131] : memref<32x128xf32, #tpu.memory_space<vmem>>, vector<32x128xf32>
    %cst_132 = arith.constant dense<0.000000e+00> : vector<32x128xf32>
    %500 = tpu.matmul %498, %499, %cst_132 {dimension_numbers = #tpu.dot_dimension_numbers<[1], [0], [0], [1], [0, 0, 1, 1], [], []>} : vector<32x32xf32>, vector<32x128xf32>, vector<32x128xf32> -> vector<32x128xf32>
    %c0_133 = arith.constant 0 : index
    %c0_134 = arith.constant 0 : index
    %501 = vector.load %arg8[%c0_133, %c0_134] : memref<1x128xf32, #tpu.memory_space<vmem>>, vector<1x128xf32>
    %502 = vector.broadcast %501 : vector<1x128xf32> to vector<32x128xf32>
    %503 = arith.addf %500, %502 : vector<32x128xf32>
    %cst_135 = arith.constant dense<0xFF800000> : vector<32xf32>
    %504 = vector.multi_reduction <maximumf>, %503, %cst_135 [1] : vector<32x128xf32> to vector<32xf32>
    %505 = vector.shape_cast %504 : vector<32xf32> to vector<32x1xf32>
    %506 = vector.broadcast %505 : vector<32x1xf32> to vector<32x128xf32>
    %507 = arith.subf %503, %506 : vector<32x128xf32>
    %508 = math.exp %507 : vector<32x128xf32>
    %cst_136 = arith.constant dense<0.000000e+00> : vector<32xf32>
    %509 = vector.multi_reduction <add>, %508, %cst_136 [1] : vector<32x128xf32> to vector<32xf32>
    %510 = vector.shape_cast %509 : vector<32xf32> to vector<32x1xf32>
    %511 = math.log %510 : vector<32x1xf32>
    %512 = vector.broadcast %511 : vector<32x1xf32> to vector<32x128xf32>
    %513 = arith.subf %507, %512 : vector<32x128xf32>
    %c0_137 = arith.constant 0 : index
    %c0_138 = arith.constant 0 : index
    %514 = vector.load %arg11[%c0_137, %c0_138] : memref<32x128xf32, #tpu.memory_space<vmem>>, vector<32x128xf32>
    tpu.vector_store %arg11[%c0_137, %c0_138], %513 {strides = array<i32>} : memref<32x128xf32, #tpu.memory_space<vmem>>, vector<32x128xf32>,
    return
  }
}

</mosaic_0001>

<llo_original>
// kernel: rnn_model_forward.1
$region0: #{rnn_model_forward.1}
  #allocation0 [shape = 'u32[]', space=smem, size = 0x4, offset = 0x4, fixed_abs, tag = 'smem constant byte address 0x4 - core index']
  #allocation1 [shape = 'u32[72,128]{1,0:T(1,128)}', space=vmem, size = 0x9000, scoped, tag = 'internal scratch']
  #allocation2 [shape = 'f32[32,32]{1,0:T(8,128)}', space=vmem, size = 0x4000, scoped, tag = 'scratch operand']
  %s0 = inlined_call_operand.vmem [shape: f32[32,32], index: 0, kind: input, shape index: {}]
  %s1 = inlined_call_operand.vmem [shape: f32[32,128], index: 1, kind: input, shape index: {}]
  %s2 = inlined_call_operand.vmem [shape: f32[32,128], index: 2, kind: input, shape index: {}]
  %s3 = inlined_call_operand.vmem [shape: f32[1,128], index: 3, kind: input, shape index: {}]
  %s4 = inlined_call_operand.vmem [shape: f32[32,128], index: 4, kind: input, shape index: {}]
  %s5 = inlined_call_operand.vmem [shape: f32[32,128], index: 5, kind: input, shape index: {}]
  %s6 = inlined_call_operand.vmem [shape: f32[1,128], index: 6, kind: input, shape index: {}]
  %s7 = inlined_call_operand.vmem [shape: f32[32,128], index: 7, kind: input, shape index: {}]
  %s8 = inlined_call_operand.vmem [shape: f32[1,128], index: 8, kind: input, shape index: {}]
  %s9 = inlined_call_operand.vmem [shape: f32[2,4,32], index: 9, kind: input, shape index: {}]
  %s10 = inlined_call_operand.vmem [shape: f32[2,4,32], index: 10, kind: input, shape index: {}]
  %s11 = inlined_call_operand.hbm [shape: f32[32,128], index: 11, kind: output, shape index: {0}]
  %s12 = inlined_call_operand.hbm [shape: f32[2,4,32], index: 12, kind: output, shape index: {1}]
  %s13 = inlined_call_operand.hbm [shape: f32[2,4,32], index: 13, kind: output, shape index: {2}]
  %14 = xla_tuple %s11, %s12, %s13
  %s15 = sld [smem:[#allocation0]]
  $region70: #{rnn_model_forward.1} parent=0
    _
  %s17 = ssub.s32 1, %s15
  %s18 = scalar_select 0, %s17, %s15
  $region1: #{rnn_model_forward.1} parent=0
    #allocation3 [shape = 'u8[16384]{0}', space=vmem, size = 0x4000, scoped, tag = 'output window, operand 0, single buffered']
    #allocation4 [shape = 's32[1]{0}', space=sflag, size = 0x4, scoped, tag = 'scoped memory for rnn_model_forward.1']
    #allocation5 [shape = 'u8[4096]{0}', space=vmem, size = 0x1000, scoped, tag = 'output window, operand 1, single buffered']
    #allocation6 [shape = 's32[1]{0}', space=sflag, size = 0x4, scoped, tag = 'scoped memory for rnn_model_forward.1']
    #allocation7 [shape = 'u8[4096]{0}', space=vmem, size = 0x1000, scoped, tag = 'output window, operand 2, single buffered']
    %19 = vsyncpa [#allocation4], 0
    %20 = vsyncpa [#allocation6], 0
    // Predicated region
    $region2: #{rnn_model_forward.1} parent=1 // pred_check
      _
    $region3: #{rnn_model_forward.1} parent=1 // pred_check_branch
      %22 = sbr.rel (0) target = $region5
    $region4: #{rnn_model_forward.1} parent=1 // pred_region
      _
    $region5: #{rnn_model_forward.1} parent=1 // pred_fallthru
      _
    // Predicated region
    $region6: #{rnn_model_forward.1} parent=1 // pred_check
      _
    $region7: #{rnn_model_forward.1} parent=1 // pred_check_branch
      %24 = sbr.rel (0) target = $region9
    $region8: #{rnn_model_forward.1} parent=1 // pred_region
      _
    $region9: #{rnn_model_forward.1} parent=1 // pred_fallthru
      _
    // Predicated region
    $region10: #{rnn_model_forward.1} parent=1 // pred_check
      _
    $region11: #{rnn_model_forward.1} parent=1 // pred_check_branch
      %26 = sbr.rel (0) target = $region13
    $region12: #{rnn_model_forward.1} parent=1 // pred_region
      _
    $region13: #{rnn_model_forward.1} parent=1 // pred_fallthru
      _
    // Predicated region
    $region14: #{rnn_model_forward.1} parent=1 // pred_check
      _
    $region15: #{rnn_model_forward.1} parent=1 // pred_check_branch
      %28 = sbr.rel (0) target = $region17
    $region16: #{rnn_model_forward.1} parent=1 // pred_region
      _
    $region17: #{rnn_model_forward.1} parent=1 // pred_fallthru
      _
    // Predicated region
    $region18: #{rnn_model_forward.1} parent=1 // pred_check
      _
    $region19: #{rnn_model_forward.1} parent=1 // pred_check_branch
      %30 = sbr.rel (0) target = $region21
    $region20: #{rnn_model_forward.1} parent=1 // pred_region
      _
    $region21: #{rnn_model_forward.1} parent=1 // pred_fallthru
      _
    // Predicated region
    $region22: #{rnn_model_forward.1} parent=1 // pred_check
      _
    $region23: #{rnn_model_forward.1} parent=1 // pred_check_branch
      %32 = sbr.rel (0) target = $region25
    $region24: #{rnn_model_forward.1} parent=1 // pred_region
      _
    $region25: #{rnn_model_forward.1} parent=1 // pred_fallthru
      _
    // Predicated region
    $region26: #{rnn_model_forward.1} parent=1 // pred_check
      _
    $region27: #{rnn_model_forward.1} parent=1 // pred_check_branch
      %34 = sbr.rel (0) target = $region29
    $region28: #{rnn_model_forward.1} parent=1 // pred_region
      _
    $region29: #{rnn_model_forward.1} parent=1 // pred_fallthru
      _
    // Predicated region
    $region30: #{rnn_model_forward.1} parent=1 // pred_check
      _
    $region31: #{rnn_model_forward.1} parent=1 // pred_check_branch
      %36 = sbr.rel (0) target = $region33
    $region32: #{rnn_model_forward.1} parent=1 // pred_region
      _
    $region33: #{rnn_model_forward.1} parent=1 // pred_fallthru
      _
    // Predicated region
    $region34: #{rnn_model_forward.1} parent=1 // pred_check
      _
    $region35: #{rnn_model_forward.1} parent=1 // pred_check_branch
      %38 = sbr.rel (0) target = $region37
    $region36: #{rnn_model_forward.1} parent=1 // pred_region
      _
    $region37: #{rnn_model_forward.1} parent=1 // pred_fallthru
      _
    // Predicated region
    $region38: #{rnn_model_forward.1} parent=1 // pred_check
      _
    $region39: #{rnn_model_forward.1} parent=1 // pred_check_branch
      %40 = sbr.rel (0) target = $region41
    $region40: #{rnn_model_forward.1} parent=1 // pred_region
      _
    $region41: #{rnn_model_forward.1} parent=1 // pred_fallthru
      _
    // Predicated region
    $region42: #{rnn_model_forward.1} parent=1 // pred_check
      _
    $region43: #{rnn_model_forward.1} parent=1 // pred_check_branch
      %42 = sbr.rel (0) target = $region45
    $region44: #{rnn_model_forward.1} parent=1 // pred_region
      _
    $region45: #{rnn_model_forward.1} parent=1 // pred_fallthru
      _
    %v43 = vld [vmem:[%s0] sm:$0xff]
    %v44 = vld [vmem:[%s0 + $0x8] sm:$0xff]
    %v45 = vld [vmem:[%s0 + $0x10] sm:$0xff]
    %v46 = vld [vmem:[%s0 + $0x18] sm:$0xff]
    %v47 = vld [vmem:[%s1] sm:$0xff]
    %v48 = vld [vmem:[%s1 + $0x8] sm:$0xff]
    %v49 = vld [vmem:[%s1 + $0x10] sm:$0xff]
    %v50 = vld [vmem:[%s1 + $0x18] sm:$0xff]
    %v51 = vld [vmem:[%s2] sm:$0xff]
    %v52 = vld [vmem:[%s2 + $0x8] sm:$0xff]
    %v53 = vld [vmem:[%s2 + $0x10] sm:$0xff]
    %v54 = vld [vmem:[%s2 + $0x18] sm:$0xff]
    %v55 = vld [vmem:[%s3] sm:$0x1]
    %v57 = vperm.slane %v55, 0
    %vm59 = vcmask 261120
    %v61 = vsel %vm59, %v43, 0
    %v64 = vsel %vm59, %v44, 0
    %v67 = vsel %vm59, %v45, 0
    %v70 = vsel %vm59, %v46, 0
    %72 = vmatpush.msra.mxu0 0.0
    %73 = vmatpush.msra.mxu0 0.0
    %74 = vmatpush.msra.mxu0 0.0
    %75 = vmatpush.msra.mxu0 0.0
    %76 = vmatpush.msra.mxu0 0.0
    %77 = vmatpush.msra.mxu0 0.0
    %78 = vmatpush.msra.mxu0 0.0
    %79 = vmatpush.msra.mxu0 0.0
    %80 = vmatpush.msra.mxu0 0.0
    %81 = vmatpush.msra.mxu0 0.0
    %82 = vmatpush.msra.mxu0 0.0
    %83 = vmatpush.msra.mxu0 0.0
    %84 = vmatpush.msra.mxu0 %v50
    %85 = vmatpush.msra.mxu0 %v49
    %86 = vmatpush.msra.mxu0 %v48
    %87 = vmatpush.msra.mxu0 %v47
    %88 = vmatmul.f32.gmra.mxu0 %v61
    %v89 = vpop.f32.mrf.mxu0
    %v90 = vadd.f32 %v57, %v89
    %91 = vmatmul.f32.gmra.mxu0 %v64
    %v92 = vpop.f32.mrf.mxu0
    %v93 = vadd.f32 %v57, %v92
    %94 = vmatmul.f32.gmra.mxu0 %v67
    %v95 = vpop.f32.mrf.mxu0
    %v96 = vadd.f32 %v57, %v95
    %97 = vmatmul.f32.gmra.mxu0 %v70
    %v98 = vpop.f32.mrf.mxu0
    %v99 = vadd.f32 %v57, %v98
    %100 = vdwg.mxu0
    %v101 = vld [vmem:[%s9] sm:$0xf]
    %v102 = vld [vmem:[%s10] sm:$0xf]
    %v104 = vsel %vm59, %v101, 0
    %106 = vmatpush.msra.mxu0 0.0
    %107 = vmatpush.msra.mxu0 0.0
    %108 = vmatpush.msra.mxu0 0.0
    %109 = vmatpush.msra.mxu0 0.0
    %110 = vmatpush.msra.mxu0 0.0
    %111 = vmatpush.msra.mxu0 0.0
    %112 = vmatpush.msra.mxu0 0.0
    %113 = vmatpush.msra.mxu0 0.0
    %114 = vmatpush.msra.mxu0 0.0
    %115 = vmatpush.msra.mxu0 0.0
    %116 = vmatpush.msra.mxu0 0.0
    %117 = vmatpush.msra.mxu0 0.0
    %118 = vmatpush.msra.mxu0 %v54
    %119 = vmatpush.msra.mxu0 %v53
    %120 = vmatpush.msra.mxu0 %v52
    %121 = vmatpush.msra.mxu0 %v51
    %122 = vmatmul.f32.gmra.mxu0 %v104
    %v123 = vpop.f32.mrf.mxu0
    %v124 = vadd.f32 0.0, %v123
    %125 = vdwg.mxu0
    %v126 = vadd.f32 %v90, %v124
    %v127 = vxor.u32 %v126, 2147483648
    %v128 = vmul.f32 %v127, 1.442695
    %v129 = vpow.pop %v128
    %v130 = vadd.f32 %v129, 1.0
    %v131 = vrcp.pop %v130
    %v132 = vmul.f32 %v130, %v131
    %v133 = vsub.f32 1.0, %v132
    %v134 = vmul.f32 %v131, %v133
    %v135 = vadd.f32 %v131, %v134
    %vm136 = vweird.f32 %v130
    %vm137 = vweird.f32 %v131
    %vm138 = vmor %vm136, %vm137
    %v139 = vsel %vm138, %v131, %v135
    %v140 = vand.u32 2147483647, %v130
    %vm141 = vcmp.eq.f32.partialorder %v140, 8.507059e+37
    %v142 = vand.u32 %v130, 2147483648
    %v143 = vor.u32 1.1754944e-38, %v142
    %v144 = vsel %vm141, %v143, %v139
    %v145 = vmul.f32 1.0, %v144
    %v146 = vtanh.pop %v126
    %148 = vrot.lane.b32.xlu0 %v102, 32
    %v149 = vpop.permute.xlu0 %148
    %v151 = vmul.f32 %v145, %v149
    %153 = vrot.lane.b32.xlu0 %v146, 64
    %v154 = vpop.permute.xlu0 %153
    %v156 = vmul.f32 %v145, %v154
    %158 = vrot.lane.b32.xlu0 %v156, 32
    %v159 = vpop.permute.xlu0 %158
    %v161 = vadd.f32 %v151, %v159
    %v162 = vtanh.pop %v161
    %164 = vrot.lane.b32.xlu0 %v162, 64
    %v165 = vpop.permute.xlu0 %164
    %v167 = vmul.f32 %v145, %v165
    %169 = vrot.lane.b32.xlu0 %v167, 32
    %v170 = vpop.permute.xlu0 %169
    %vm172 = vcmask 257024
    %173 = vst.msk [vmem:[#allocation2] sm:$0xf] %vm172, %v170
    %v174 = vsel %vm59, %v170, 0
    %176 = vmatpush.msra.mxu0 0.0
    %177 = vmatpush.msra.mxu0 0.0
    %178 = vmatpush.msra.mxu0 0.0
    %179 = vmatpush.msra.mxu0 0.0
    %180 = vmatpush.msra.mxu0 0.0
    %181 = vmatpush.msra.mxu0 0.0
    %182 = vmatpush.msra.mxu0 0.0
    %183 = vmatpush.msra.mxu0 0.0
    %184 = vmatpush.msra.mxu0 0.0
    %185 = vmatpush.msra.mxu0 0.0
    %186 = vmatpush.msra.mxu0 0.0
    %187 = vmatpush.msra.mxu0 0.0
    %188 = vmatpush.msra.mxu0 %v54
    %189 = vmatpush.msra.mxu0 %v53
    %190 = vmatpush.msra.mxu0 %v52
    %191 = vmatpush.msra.mxu0 %v51
    %192 = vmatmul.f32.gmra.mxu0 %v174
    %v193 = vpop.f32.mrf.mxu0
    %v194 = vadd.f32 0.0, %v193
    %195 = vdwg.mxu0
    %v197 = vrot.slane %v194, 4
    %v199 = vadd.f32 %v90, %v197
    %v200 = vxor.u32 %v199, 2147483648
    %v201 = vmul.f32 %v200, 1.442695
    %v202 = vpow.pop %v201
    %v203 = vadd.f32 %v202, 1.0
    %v204 = vrcp.pop %v203
    %v205 = vmul.f32 %v203, %v204
    %v206 = vsub.f32 1.0, %v205
    %v207 = vmul.f32 %v204, %v206
    %v208 = vadd.f32 %v204, %v207
    %vm209 = vweird.f32 %v203
    %vm210 = vweird.f32 %v204
    %vm211 = vmor %vm209, %vm210
    %v212 = vsel %vm211, %v204, %v208
    %v213 = vand.u32 2147483647, %v203
    %vm214 = vcmp.eq.f32.partialorder %v213, 8.507059e+37
    %v215 = vand.u32 %v203, 2147483648
    %v216 = vor.u32 1.1754944e-38, %v215
    %v217 = vsel %vm214, %v216, %v212
    %v218 = vmul.f32 1.0, %v217
    %v219 = vtanh.pop %v199
    %v221 = vrot.slane %v161, 4
    %v223 = vmul.f32 %v218, %v221
    %225 = vrot.lane.b32.xlu0 %v219, 64
    %v226 = vpop.permute.xlu0 %225
    %v228 = vmul.f32 %v218, %v226
    %230 = vrot.lane.b32.xlu0 %v228, 32
    %v231 = vpop.permute.xlu0 %230
    %v233 = vadd.f32 %v223, %v231
    %v234 = vtanh.pop %v233
    %236 = vrot.lane.b32.xlu0 %v234, 64
    %v237 = vpop.permute.xlu0 %236
    %v239 = vmul.f32 %v218, %v237
    %241 = vrot.lane.b32.xlu0 %v239, 32
    %v242 = vpop.permute.xlu0 %241
    %vm244 = vcmask 261124
    %245 = vst.msk [vmem:[#allocation2] sm:$0xf0] %vm244, %v242
    %v246 = vrot.slane %v239, 4
    %247 = vrot.lane.b32.xlu0 %v246, 32
    %v248 = vpop.permute.xlu0 %247
    %v249 = vsel %vm59, %v248, 0
    %251 = vmatpush.msra.mxu0 0.0
    %252 = vmatpush.msra.mxu0 0.0
    %253 = vmatpush.msra.mxu0 0.0
    %254 = vmatpush.msra.mxu0 0.0
    %255 = vmatpush.msra.mxu0 0.0
    %256 = vmatpush.msra.mxu0 0.0
    %257 = vmatpush.msra.mxu0 0.0
    %258 = vmatpush.msra.mxu0 0.0
    %259 = vmatpush.msra.mxu0 0.0
    %260 = vmatpush.msra.mxu0 0.0
    %261 = vmatpush.msra.mxu0 0.0
    %262 = vmatpush.msra.mxu0 0.0
    %263 = vmatpush.msra.mxu0 %v54
    %264 = vmatpush.msra.mxu0 %v53
    %265 = vmatpush.msra.mxu0 %v52
    %266 = vmatpush.msra.mxu0 %v51
    %267 = vmatmul.f32.gmra.mxu0 %v249
    %v268 = vpop.f32.mrf.mxu0
    %v269 = vadd.f32 0.0, %v268
    %270 = vdwg.mxu0
    %v271 = vadd.f32 %v93, %v269
    %v272 = vxor.u32 %v271, 2147483648
    %v273 = vmul.f32 %v272, 1.442695
    %v274 = vpow.pop %v273
    %v275 = vadd.f32 %v274, 1.0
    %v276 = vrcp.pop %v275
    %v277 = vmul.f32 %v275, %v276
    %v278 = vsub.f32 1.0, %v277
    %v279 = vmul.f32 %v276, %v278
    %v280 = vadd.f32 %v276, %v279
    %vm281 = vweird.f32 %v275
    %vm282 = vweird.f32 %v276
    %vm283 = vmor %vm281, %vm282
    %v284 = vsel %vm283, %v276, %v280
    %v285 = vand.u32 2147483647, %v275
    %vm286 = vcmp.eq.f32.partialorder %v285, 8.507059e+37
    %v287 = vand.u32 %v275, 2147483648
    %v288 = vor.u32 1.1754944e-38, %v287
    %v289 = vsel %vm286, %v288, %v284
    %v290 = vmul.f32 1.0, %v289
    %v291 = vtanh.pop %v271
    %v293 = vrot.slane %v233, 4
    %v295 = vmul.f32 %v290, %v293
    %297 = vrot.lane.b32.xlu0 %v291, 64
    %v298 = vpop.permute.xlu0 %297
    %v300 = vmul.f32 %v290, %v298
    %302 = vrot.lane.b32.xlu0 %v300, 32
    %v303 = vpop.permute.xlu0 %302
    %v305 = vadd.f32 %v295, %v303
    %v306 = vtanh.pop %v305
    %308 = vrot.lane.b32.xlu0 %v306, 64
    %v309 = vpop.permute.xlu0 %308
    %v311 = vmul.f32 %v290, %v309
    %313 = vrot.lane.b32.xlu0 %v311, 32
    %v314 = vpop.permute.xlu0 %313
    %316 = vst.msk [vmem:[#allocation2 + $0x8] sm:$0xf] %vm172, %v314
    %v317 = vsel %vm59, %v314, 0
    %319 = vmatpush.msra.mxu0 0.0
    %320 = vmatpush.msra.mxu0 0.0
    %321 = vmatpush.msra.mxu0 0.0
    %322 = vmatpush.msra.mxu0 0.0
    %323 = vmatpush.msra.mxu0 0.0
    %324 = vmatpush.msra.mxu0 0.0
    %325 = vmatpush.msra.mxu0 0.0
    %326 = vmatpush.msra.mxu0 0.0
    %327 = vmatpush.msra.mxu0 0.0
    %328 = vmatpush.msra.mxu0 0.0
    %329 = vmatpush.msra.mxu0 0.0
    %330 = vmatpush.msra.mxu0 0.0
    %331 = vmatpush.msra.mxu0 %v54
    %332 = vmatpush.msra.mxu0 %v53
    %333 = vmatpush.msra.mxu0 %v52
    %334 = vmatpush.msra.mxu0 %v51
    %335 = vmatmul.f32.gmra.mxu0 %v317
    %v336 = vpop.f32.mrf.mxu0
    %v337 = vadd.f32 0.0, %v336
    %338 = vdwg.mxu0
    %v340 = vrot.slane %v337, 4
    %v342 = vadd.f32 %v93, %v340
    %v343 = vxor.u32 %v342, 2147483648
    %v344 = vmul.f32 %v343, 1.442695
    %v345 = vpow.pop %v344
    %v346 = vadd.f32 %v345, 1.0
    %v347 = vrcp.pop %v346
    %v348 = vmul.f32 %v346, %v347
    %v349 = vsub.f32 1.0, %v348
    %v350 = vmul.f32 %v347, %v349
    %v351 = vadd.f32 %v347, %v350
    %vm352 = vweird.f32 %v346
    %vm353 = vweird.f32 %v347
    %vm354 = vmor %vm352, %vm353
    %v355 = vsel %vm354, %v347, %v351
    %v356 = vand.u32 2147483647, %v346
    %vm357 = vcmp.eq.f32.partialorder %v356, 8.507059e+37
    %v358 = vand.u32 %v346, 2147483648
    %v359 = vor.u32 1.1754944e-38, %v358
    %v360 = vsel %vm357, %v359, %v355
    %v361 = vmul.f32 1.0, %v360
    %v362 = vtanh.pop %v342
    %v364 = vrot.slane %v305, 4
    %v366 = vmul.f32 %v361, %v364
    %368 = vrot.lane.b32.xlu0 %v362, 64
    %v369 = vpop.permute.xlu0 %368
    %v371 = vmul.f32 %v361, %v369
    %373 = vrot.lane.b32.xlu0 %v371, 32
    %v374 = vpop.permute.xlu0 %373
    %v376 = vadd.f32 %v366, %v374
    %v377 = vtanh.pop %v376
    %379 = vrot.lane.b32.xlu0 %v377, 64
    %v380 = vpop.permute.xlu0 %379
    %v382 = vmul.f32 %v361, %v380
    %384 = vrot.lane.b32.xlu0 %v382, 32
    %v385 = vpop.permute.xlu0 %384
    %387 = vst.msk [vmem:[#allocation2 + $0x8] sm:$0xf0] %vm244, %v385
    %v388 = vrot.slane %v382, 4
    %389 = vrot.lane.b32.xlu0 %v388, 32
    %v390 = vpop.permute.xlu0 %389
    %v391 = vsel %vm59, %v390, 0
    %393 = vmatpush.msra.mxu0 0.0
    %394 = vmatpush.msra.mxu0 0.0
    %395 = vmatpush.msra.mxu0 0.0
    %396 = vmatpush.msra.mxu0 0.0
    %397 = vmatpush.msra.mxu0 0.0
    %398 = vmatpush.msra.mxu0 0.0
    %399 = vmatpush.msra.mxu0 0.0
    %400 = vmatpush.msra.mxu0 0.0
    %401 = vmatpush.msra.mxu0 0.0
    %402 = vmatpush.msra.mxu0 0.0
    %403 = vmatpush.msra.mxu0 0.0
    %404 = vmatpush.msra.mxu0 0.0
    %405 = vmatpush.msra.mxu0 %v54
    %406 = vmatpush.msra.mxu0 %v53
    %407 = vmatpush.msra.mxu0 %v52
    %408 = vmatpush.msra.mxu0 %v51
    %409 = vmatmul.f32.gmra.mxu0 %v391
    %v410 = vpop.f32.mrf.mxu0
    %v411 = vadd.f32 0.0, %v410
    %412 = vdwg.mxu0
    %v413 = vadd.f32 %v96, %v411
    %v414 = vxor.u32 %v413, 2147483648
    %v415 = vmul.f32 %v414, 1.442695
    %v416 = vpow.pop %v415
    %v417 = vadd.f32 %v416, 1.0
    %v418 = vrcp.pop %v417
    %v419 = vmul.f32 %v417, %v418
    %v420 = vsub.f32 1.0, %v419
    %v421 = vmul.f32 %v418, %v420
    %v422 = vadd.f32 %v418, %v421
    %vm423 = vweird.f32 %v417
    %vm424 = vweird.f32 %v418
    %vm425 = vmor %vm423, %vm424
    %v426 = vsel %vm425, %v418, %v422
    %v427 = vand.u32 2147483647, %v417
    %vm428 = vcmp.eq.f32.partialorder %v427, 8.507059e+37
    %v429 = vand.u32 %v417, 2147483648
    %v430 = vor.u32 1.1754944e-38, %v429
    %v431 = vsel %vm428, %v430, %v426
    %v432 = vmul.f32 1.0, %v431
    %v433 = vtanh.pop %v413
    %v435 = vrot.slane %v376, 4
    %v437 = vmul.f32 %v432, %v435
    %439 = vrot.lane.b32.xlu0 %v433, 64
    %v440 = vpop.permute.xlu0 %439
    %v442 = vmul.f32 %v432, %v440
    %444 = vrot.lane.b32.xlu0 %v442, 32
    %v445 = vpop.permute.xlu0 %444
    %v447 = vadd.f32 %v437, %v445
    %v448 = vtanh.pop %v447
    %450 = vrot.lane.b32.xlu0 %v448, 64
    %v451 = vpop.permute.xlu0 %450
    %v453 = vmul.f32 %v432, %v451
    %455 = vrot.lane.b32.xlu0 %v453, 32
    %v456 = vpop.permute.xlu0 %455
    %458 = vst.msk [vmem:[#allocation2 + $0x10] sm:$0xf] %vm172, %v456
    %v459 = vsel %vm59, %v456, 0
    %461 = vmatpush.msra.mxu0 0.0
    %462 = vmatpush.msra.mxu0 0.0
    %463 = vmatpush.msra.mxu0 0.0
    %464 = vmatpush.msra.mxu0 0.0
    %465 = vmatpush.msra.mxu0 0.0
    %466 = vmatpush.msra.mxu0 0.0
    %467 = vmatpush.msra.mxu0 0.0
    %468 = vmatpush.msra.mxu0 0.0
    %469 = vmatpush.msra.mxu0 0.0
    %470 = vmatpush.msra.mxu0 0.0
    %471 = vmatpush.msra.mxu0 0.0
    %472 = vmatpush.msra.mxu0 0.0
    %473 = vmatpush.msra.mxu0 %v54
    %474 = vmatpush.msra.mxu0 %v53
    %475 = vmatpush.msra.mxu0 %v52
    %476 = vmatpush.msra.mxu0 %v51
    %477 = vmatmul.f32.gmra.mxu0 %v459
    %v478 = vpop.f32.mrf.mxu0
    %v479 = vadd.f32 0.0, %v478
    %480 = vdwg.mxu0
    %v482 = vrot.slane %v479, 4
    %v484 = vadd.f32 %v96, %v482
    %v485 = vxor.u32 %v484, 2147483648
    %v486 = vmul.f32 %v485, 1.442695
    %v487 = vpow.pop %v486
    %v488 = vadd.f32 %v487, 1.0
    %v489 = vrcp.pop %v488
    %v490 = vmul.f32 %v488, %v489
    %v491 = vsub.f32 1.0, %v490
    %v492 = vmul.f32 %v489, %v491
    %v493 = vadd.f32 %v489, %v492
    %vm494 = vweird.f32 %v488
    %vm495 = vweird.f32 %v489
    %vm496 = vmor %vm494, %vm495
    %v497 = vsel %vm496, %v489, %v493
    %v498 = vand.u32 2147483647, %v488
    %vm499 = vcmp.eq.f32.partialorder %v498, 8.507059e+37
    %v500 = vand.u32 %v488, 2147483648
    %v501 = vor.u32 1.1754944e-38, %v500
    %v502 = vsel %vm499, %v501, %v497
    %v503 = vmul.f32 1.0, %v502
    %v504 = vtanh.pop %v484
    %v506 = vrot.slane %v447, 4
    %v508 = vmul.f32 %v503, %v506
    %510 = vrot.lane.b32.xlu0 %v504, 64
    %v511 = vpop.permute.xlu0 %510
    %v513 = vmul.f32 %v503, %v511
    %515 = vrot.lane.b32.xlu0 %v513, 32
    %v516 = vpop.permute.xlu0 %515
    %v518 = vadd.f32 %v508, %v516
    %v519 = vtanh.pop %v518
    %521 = vrot.lane.b32.xlu0 %v519, 64
    %v522 = vpop.permute.xlu0 %521
    %v524 = vmul.f32 %v503, %v522
    %526 = vrot.lane.b32.xlu0 %v524, 32
    %v527 = vpop.permute.xlu0 %526
    %529 = vst.msk [vmem:[#allocation2 + $0x10] sm:$0xf0] %vm244, %v527
    %v530 = vrot.slane %v524, 4
    %531 = vrot.lane.b32.xlu0 %v530, 32
    %v532 = vpop.permute.xlu0 %531
    %v533 = vsel %vm59, %v532, 0
    %535 = vmatpush.msra.mxu0 0.0
    %536 = vmatpush.msra.mxu0 0.0
    %537 = vmatpush.msra.mxu0 0.0
    %538 = vmatpush.msra.mxu0 0.0
    %539 = vmatpush.msra.mxu0 0.0
    %540 = vmatpush.msra.mxu0 0.0
    %541 = vmatpush.msra.mxu0 0.0
    %542 = vmatpush.msra.mxu0 0.0
    %543 = vmatpush.msra.mxu0 0.0
    %544 = vmatpush.msra.mxu0 0.0
    %545 = vmatpush.msra.mxu0 0.0
    %546 = vmatpush.msra.mxu0 0.0
    %547 = vmatpush.msra.mxu0 %v54
    %548 = vmatpush.msra.mxu0 %v53
    %549 = vmatpush.msra.mxu0 %v52
    %550 = vmatpush.msra.mxu0 %v51
    %551 = vmatmul.f32.gmra.mxu0 %v533
    %v552 = vpop.f32.mrf.mxu0
    %v553 = vadd.f32 0.0, %v552
    %554 = vdwg.mxu0
    %v555 = vadd.f32 %v99, %v553
    %v556 = vxor.u32 %v555, 2147483648
    %v557 = vmul.f32 %v556, 1.442695
    %v558 = vpow.pop %v557
    %v559 = vadd.f32 %v558, 1.0
    %v560 = vrcp.pop %v559
    %v561 = vmul.f32 %v559, %v560
    %v562 = vsub.f32 1.0, %v561
    %v563 = vmul.f32 %v560, %v562
    %v564 = vadd.f32 %v560, %v563
    %vm565 = vweird.f32 %v559
    %vm566 = vweird.f32 %v560
    %vm567 = vmor %vm565, %vm566
    %v568 = vsel %vm567, %v560, %v564
    %v569 = vand.u32 2147483647, %v559
    %vm570 = vcmp.eq.f32.partialorder %v569, 8.507059e+37
    %v571 = vand.u32 %v559, 2147483648
    %v572 = vor.u32 1.1754944e-38, %v571
    %v573 = vsel %vm570, %v572, %v568
    %v574 = vmul.f32 1.0, %v573
    %v575 = vtanh.pop %v555
    %v577 = vrot.slane %v518, 4
    %v579 = vmul.f32 %v574, %v577
    %581 = vrot.lane.b32.xlu0 %v575, 64
    %v582 = vpop.permute.xlu0 %581
    %v584 = vmul.f32 %v574, %v582
    %586 = vrot.lane.b32.xlu0 %v584, 32
    %v587 = vpop.permute.xlu0 %586
    %v589 = vadd.f32 %v579, %v587
    %v590 = vtanh.pop %v589
    %592 = vrot.lane.b32.xlu0 %v590, 64
    %v593 = vpop.permute.xlu0 %592
    %v595 = vmul.f32 %v574, %v593
    %597 = vrot.lane.b32.xlu0 %v595, 32
    %v598 = vpop.permute.xlu0 %597
    %600 = vst.msk [vmem:[#allocation2 + $0x18] sm:$0xf] %vm172, %v598
    %v601 = vsel %vm59, %v598, 0
    %603 = vmatpush.msra.mxu0 0.0
    %604 = vmatpush.msra.mxu0 0.0
    %605 = vmatpush.msra.mxu0 0.0
    %606 = vmatpush.msra.mxu0 0.0
    %607 = vmatpush.msra.mxu0 0.0
    %608 = vmatpush.msra.mxu0 0.0
    %609 = vmatpush.msra.mxu0 0.0
    %610 = vmatpush.msra.mxu0 0.0
    %611 = vmatpush.msra.mxu0 0.0
    %612 = vmatpush.msra.mxu0 0.0
    %613 = vmatpush.msra.mxu0 0.0
    %614 = vmatpush.msra.mxu0 0.0
    %615 = vmatpush.msra.mxu0 %v54
    %616 = vmatpush.msra.mxu0 %v53
    %617 = vmatpush.msra.mxu0 %v52
    %618 = vmatpush.msra.mxu0 %v51
    %619 = vmatmul.f32.gmra.mxu0 %v601
    %v620 = vpop.f32.mrf.mxu0
    %v621 = vadd.f32 0.0, %v620
    %622 = vdwg.mxu0
    %v624 = vrot.slane %v621, 4
    %v626 = vadd.f32 %v99, %v624
    %v627 = vxor.u32 %v626, 2147483648
    %v628 = vmul.f32 %v627, 1.442695
    %v629 = vpow.pop %v628
    %v630 = vadd.f32 %v629, 1.0
    %v631 = vrcp.pop %v630
    %v632 = vmul.f32 %v630, %v631
    %v633 = vsub.f32 1.0, %v632
    %v634 = vmul.f32 %v631, %v633
    %v635 = vadd.f32 %v631, %v634
    %vm636 = vweird.f32 %v630
    %vm637 = vweird.f32 %v631
    %vm638 = vmor %vm636, %vm637
    %v639 = vsel %vm638, %v631, %v635
    %v640 = vand.u32 2147483647, %v630
    %vm641 = vcmp.eq.f32.partialorder %v640, 8.507059e+37
    %v642 = vand.u32 %v630, 2147483648
    %v643 = vor.u32 1.1754944e-38, %v642
    %v644 = vsel %vm641, %v643, %v639
    %v645 = vmul.f32 1.0, %v644
    %v646 = vtanh.pop %v626
    %v648 = vrot.slane %v589, 4
    %v650 = vmul.f32 %v645, %v648
    %652 = vrot.lane.b32.xlu0 %v646, 64
    %v653 = vpop.permute.xlu0 %652
    %v655 = vmul.f32 %v645, %v653
    %657 = vrot.lane.b32.xlu0 %v655, 32
    %v658 = vpop.permute.xlu0 %657
    %v660 = vadd.f32 %v650, %v658
    %v661 = vtanh.pop %v660
    %663 = vrot.lane.b32.xlu0 %v661, 64
    %v664 = vpop.permute.xlu0 %663
    %v666 = vmul.f32 %v645, %v664
    %668 = vrot.lane.b32.xlu0 %v666, 32
    %v669 = vpop.permute.xlu0 %668
    %671 = vst.msk [vmem:[#allocation2 + $0x18] sm:$0xf0] %vm244, %v669
    %672 = vst.msk [vmem:[#allocation5 - $0x4] sm:$0xf0] %vm244, %v669
    %674 = vrot.lane.b32.xlu0 %v660, 96
    %v675 = vpop.permute.xlu0 %674
    %677 = vst.msk [vmem:[#allocation7 - $0x4] sm:$0xf0] %vm244, %v675
    %v678 = vld [vmem:[#allocation2] sm:$0xff]
    %v679 = vld [vmem:[#allocation2 + $0x8] sm:$0xff]
    %v680 = vld [vmem:[#allocation2 + $0x10] sm:$0xff]
    %v681 = vld [vmem:[#allocation2 + $0x18] sm:$0xff]
    %v682 = vld [vmem:[%s4] sm:$0xff]
    %v683 = vld [vmem:[%s4 + $0x8] sm:$0xff]
    %v684 = vld [vmem:[%s4 + $0x10] sm:$0xff]
    %v685 = vld [vmem:[%s4 + $0x18] sm:$0xff]
    %v686 = vld [vmem:[%s5] sm:$0xff]
    %v687 = vld [vmem:[%s5 + $0x8] sm:$0xff]
    %v688 = vld [vmem:[%s5 + $0x10] sm:$0xff]
    %v689 = vld [vmem:[%s5 + $0x18] sm:$0xff]
    %v690 = vld [vmem:[%s6] sm:$0x1]
    %v692 = vperm.slane %v690, 0
    %v695 = vsel %vm59, %v678, 0
    %v698 = vsel %vm59, %v679, 0
    %v701 = vsel %vm59, %v680, 0
    %v704 = vsel %vm59, %v681, 0
    %706 = vmatpush.msra.mxu0 0.0
    %707 = vmatpush.msra.mxu0 0.0
    %708 = vmatpush.msra.mxu0 0.0
    %709 = vmatpush.msra.mxu0 0.0
    %710 = vmatpush.msra.mxu0 0.0
    %711 = vmatpush.msra.mxu0 0.0
    %712 = vmatpush.msra.mxu0 0.0
    %713 = vmatpush.msra.mxu0 0.0
    %714 = vmatpush.msra.mxu0 0.0
    %715 = vmatpush.msra.mxu0 0.0
    %716 = vmatpush.msra.mxu0 0.0
    %717 = vmatpush.msra.mxu0 0.0
    %718 = vmatpush.msra.mxu0 %v685
    %719 = vmatpush.msra.mxu0 %v684
    %720 = vmatpush.msra.mxu0 %v683
    %721 = vmatpush.msra.mxu0 %v682
    %722 = vmatmul.f32.gmra.mxu0 %v695
    %v723 = vpop.f32.mrf.mxu0
    %v724 = vadd.f32 %v692, %v723
    %725 = vmatmul.f32.gmra.mxu0 %v698
    %v726 = vpop.f32.mrf.mxu0
    %v727 = vadd.f32 %v692, %v726
    %728 = vmatmul.f32.gmra.mxu0 %v701
    %v729 = vpop.f32.mrf.mxu0
    %v730 = vadd.f32 %v692, %v729
    %731 = vmatmul.f32.gmra.mxu0 %v704
    %v732 = vpop.f32.mrf.mxu0
    %v733 = vadd.f32 %v692, %v732
    %734 = vdwg.mxu0
    %s735 = scalar_lea.vmem %s9, 4
    %v736 = vld [vmem:[%s735] sm:$0xf]
    %s737 = scalar_lea.vmem %s10, 4
    %v738 = vld [vmem:[%s737] sm:$0xf]
    %v740 = vsel %vm59, %v736, 0
    %742 = vmatpush.msra.mxu0 0.0
    %743 = vmatpush.msra.mxu0 0.0
    %744 = vmatpush.msra.mxu0 0.0
    %745 = vmatpush.msra.mxu0 0.0
    %746 = vmatpush.msra.mxu0 0.0
    %747 = vmatpush.msra.mxu0 0.0
    %748 = vmatpush.msra.mxu0 0.0
    %749 = vmatpush.msra.mxu0 0.0
    %750 = vmatpush.msra.mxu0 0.0
    %751 = vmatpush.msra.mxu0 0.0
    %752 = vmatpush.msra.mxu0 0.0
    %753 = vmatpush.msra.mxu0 0.0
    %754 = vmatpush.msra.mxu0 %v689
    %755 = vmatpush.msra.mxu0 %v688
    %756 = vmatpush.msra.mxu0 %v687
    %757 = vmatpush.msra.mxu0 %v686
    %758 = vmatmul.f32.gmra.mxu0 %v740
    %v759 = vpop.f32.mrf.mxu0
    %v760 = vadd.f32 0.0, %v759
    %761 = vdwg.mxu0
    %v762 = vadd.f32 %v724, %v760
    %v763 = vxor.u32 %v762, 2147483648
    %v764 = vmul.f32 %v763, 1.442695
    %v765 = vpow.pop %v764
    %v766 = vadd.f32 %v765, 1.0
    %v767 = vrcp.pop %v766
    %v768 = vmul.f32 %v766, %v767
    %v769 = vsub.f32 1.0, %v768
    %v770 = vmul.f32 %v767, %v769
    %v771 = vadd.f32 %v767, %v770
    %vm772 = vweird.f32 %v766
    %vm773 = vweird.f32 %v767
    %vm774 = vmor %vm772, %vm773
    %v775 = vsel %vm774, %v767, %v771
    %v776 = vand.u32 2147483647, %v766
    %vm777 = vcmp.eq.f32.partialorder %v776, 8.507059e+37
    %v778 = vand.u32 %v766, 2147483648
    %v779 = vor.u32 1.1754944e-38, %v778
    %v780 = vsel %vm777, %v779, %v775
    %v781 = vmul.f32 1.0, %v780
    %v782 = vtanh.pop %v762
    %784 = vrot.lane.b32.xlu0 %v738, 32
    %v785 = vpop.permute.xlu0 %784
    %v787 = vmul.f32 %v781, %v785
    %789 = vrot.lane.b32.xlu0 %v782, 64
    %v790 = vpop.permute.xlu0 %789
    %v792 = vmul.f32 %v781, %v790
    %794 = vrot.lane.b32.xlu0 %v792, 32
    %v795 = vpop.permute.xlu0 %794
    %v797 = vadd.f32 %v787, %v795
    %v798 = vtanh.pop %v797
    %800 = vrot.lane.b32.xlu0 %v798, 64
    %v801 = vpop.permute.xlu0 %800
    %v803 = vmul.f32 %v781, %v801
    %805 = vrot.lane.b32.xlu0 %v803, 32
    %v806 = vpop.permute.xlu0 %805
    %808 = vst.msk [vmem:[#allocation2] sm:$0xf] %vm172, %v806
    %v809 = vsel %vm59, %v806, 0
    %811 = vmatpush.msra.mxu0 0.0
    %812 = vmatpush.msra.mxu0 0.0
    %813 = vmatpush.msra.mxu0 0.0
    %814 = vmatpush.msra.mxu0 0.0
    %815 = vmatpush.msra.mxu0 0.0
    %816 = vmatpush.msra.mxu0 0.0
    %817 = vmatpush.msra.mxu0 0.0
    %818 = vmatpush.msra.mxu0 0.0
    %819 = vmatpush.msra.mxu0 0.0
    %820 = vmatpush.msra.mxu0 0.0
    %821 = vmatpush.msra.mxu0 0.0
    %822 = vmatpush.msra.mxu0 0.0
    %823 = vmatpush.msra.mxu0 %v689
    %824 = vmatpush.msra.mxu0 %v688
    %825 = vmatpush.msra.mxu0 %v687
    %826 = vmatpush.msra.mxu0 %v686
    %827 = vmatmul.f32.gmra.mxu0 %v809
    %v828 = vpop.f32.mrf.mxu0
    %v829 = vadd.f32 0.0, %v828
    %830 = vdwg.mxu0
    %v832 = vrot.slane %v829, 4
    %v834 = vadd.f32 %v724, %v832
    %v835 = vxor.u32 %v834, 2147483648
    %v836 = vmul.f32 %v835, 1.442695
    %v837 = vpow.pop %v836
    %v838 = vadd.f32 %v837, 1.0
    %v839 = vrcp.pop %v838
    %v840 = vmul.f32 %v838, %v839
    %v841 = vsub.f32 1.0, %v840
    %v842 = vmul.f32 %v839, %v841
    %v843 = vadd.f32 %v839, %v842
    %vm844 = vweird.f32 %v838
    %vm845 = vweird.f32 %v839
    %vm846 = vmor %vm844, %vm845
    %v847 = vsel %vm846, %v839, %v843
    %v848 = vand.u32 2147483647, %v838
    %vm849 = vcmp.eq.f32.partialorder %v848, 8.507059e+37
    %v850 = vand.u32 %v838, 2147483648
    %v851 = vor.u32 1.1754944e-38, %v850
    %v852 = vsel %vm849, %v851, %v847
    %v853 = vmul.f32 1.0, %v852
    %v854 = vtanh.pop %v834
    %v856 = vrot.slane %v797, 4
    %v858 = vmul.f32 %v853, %v856
    %860 = vrot.lane.b32.xlu0 %v854, 64
    %v861 = vpop.permute.xlu0 %860
    %v863 = vmul.f32 %v853, %v861
    %865 = vrot.lane.b32.xlu0 %v863, 32
    %v866 = vpop.permute.xlu0 %865
    %v868 = vadd.f32 %v858, %v866
    %v869 = vtanh.pop %v868
    %871 = vrot.lane.b32.xlu0 %v869, 64
    %v872 = vpop.permute.xlu0 %871
    %v874 = vmul.f32 %v853, %v872
    %876 = vrot.lane.b32.xlu0 %v874, 32
    %v877 = vpop.permute.xlu0 %876
    %879 = vst.msk [vmem:[#allocation2] sm:$0xf0] %vm244, %v877
    %v880 = vrot.slane %v874, 4
    %881 = vrot.lane.b32.xlu0 %v880, 32
    %v882 = vpop.permute.xlu0 %881
    %v883 = vsel %vm59, %v882, 0
    %885 = vmatpush.msra.mxu0 0.0
    %886 = vmatpush.msra.mxu0 0.0
    %887 = vmatpush.msra.mxu0 0.0
    %888 = vmatpush.msra.mxu0 0.0
    %889 = vmatpush.msra.mxu0 0.0
    %890 = vmatpush.msra.mxu0 0.0
    %891 = vmatpush.msra.mxu0 0.0
    %892 = vmatpush.msra.mxu0 0.0
    %893 = vmatpush.msra.mxu0 0.0
    %894 = vmatpush.msra.mxu0 0.0
    %895 = vmatpush.msra.mxu0 0.0
    %896 = vmatpush.msra.mxu0 0.0
    %897 = vmatpush.msra.mxu0 %v689
    %898 = vmatpush.msra.mxu0 %v688
    %899 = vmatpush.msra.mxu0 %v687
    %900 = vmatpush.msra.mxu0 %v686
    %901 = vmatmul.f32.gmra.mxu0 %v883
    %v902 = vpop.f32.mrf.mxu0
    %v903 = vadd.f32 0.0, %v902
    %904 = vdwg.mxu0
    %v905 = vadd.f32 %v727, %v903
    %v906 = vxor.u32 %v905, 2147483648
    %v907 = vmul.f32 %v906, 1.442695
    %v908 = vpow.pop %v907
    %v909 = vadd.f32 %v908, 1.0
    %v910 = vrcp.pop %v909
    %v911 = vmul.f32 %v909, %v910
    %v912 = vsub.f32 1.0, %v911
    %v913 = vmul.f32 %v910, %v912
    %v914 = vadd.f32 %v910, %v913
    %vm915 = vweird.f32 %v909
    %vm916 = vweird.f32 %v910
    %vm917 = vmor %vm915, %vm916
    %v918 = vsel %vm917, %v910, %v914
    %v919 = vand.u32 2147483647, %v909
    %vm920 = vcmp.eq.f32.partialorder %v919, 8.507059e+37
    %v921 = vand.u32 %v909, 2147483648
    %v922 = vor.u32 1.1754944e-38, %v921
    %v923 = vsel %vm920, %v922, %v918
    %v924 = vmul.f32 1.0, %v923
    %v925 = vtanh.pop %v905
    %v927 = vrot.slane %v868, 4
    %v929 = vmul.f32 %v924, %v927
    %931 = vrot.lane.b32.xlu0 %v925, 64
    %v932 = vpop.permute.xlu0 %931
    %v934 = vmul.f32 %v924, %v932
    %936 = vrot.lane.b32.xlu0 %v934, 32
    %v937 = vpop.permute.xlu0 %936
    %v939 = vadd.f32 %v929, %v937
    %v940 = vtanh.pop %v939
    %942 = vrot.lane.b32.xlu0 %v940, 64
    %v943 = vpop.permute.xlu0 %942
    %v945 = vmul.f32 %v924, %v943
    %947 = vrot.lane.b32.xlu0 %v945, 32
    %v948 = vpop.permute.xlu0 %947
    %950 = vst.msk [vmem:[#allocation2 + $0x8] sm:$0xf] %vm172, %v948
    %v951 = vsel %vm59, %v948, 0
    %953 = vmatpush.msra.mxu0 0.0
    %954 = vmatpush.msra.mxu0 0.0
    %955 = vmatpush.msra.mxu0 0.0
    %956 = vmatpush.msra.mxu0 0.0
    %957 = vmatpush.msra.mxu0 0.0
    %958 = vmatpush.msra.mxu0 0.0
    %959 = vmatpush.msra.mxu0 0.0
    %960 = vmatpush.msra.mxu0 0.0
    %961 = vmatpush.msra.mxu0 0.0
    %962 = vmatpush.msra.mxu0 0.0
    %963 = vmatpush.msra.mxu0 0.0
    %964 = vmatpush.msra.mxu0 0.0
    %965 = vmatpush.msra.mxu0 %v689
    %966 = vmatpush.msra.mxu0 %v688
    %967 = vmatpush.msra.mxu0 %v687
    %968 = vmatpush.msra.mxu0 %v686
    %969 = vmatmul.f32.gmra.mxu0 %v951
    %v970 = vpop.f32.mrf.mxu0
    %v971 = vadd.f32 0.0, %v970
    %972 = vdwg.mxu0
    %v974 = vrot.slane %v971, 4
    %v976 = vadd.f32 %v727, %v974
    %v977 = vxor.u32 %v976, 2147483648
    %v978 = vmul.f32 %v977, 1.442695
    %v979 = vpow.pop %v978
    %v980 = vadd.f32 %v979, 1.0
    %v981 = vrcp.pop %v980
    %v982 = vmul.f32 %v980, %v981
    %v983 = vsub.f32 1.0, %v982
    %v984 = vmul.f32 %v981, %v983
    %v985 = vadd.f32 %v981, %v984
    %vm986 = vweird.f32 %v980
    %vm987 = vweird.f32 %v981
    %vm988 = vmor %vm986, %vm987
    %v989 = vsel %vm988, %v981, %v985
    %v990 = vand.u32 2147483647, %v980
    %vm991 = vcmp.eq.f32.partialorder %v990, 8.507059e+37
    %v992 = vand.u32 %v980, 2147483648
    %v993 = vor.u32 1.1754944e-38, %v992
    %v994 = vsel %vm991, %v993, %v989
    %v995 = vmul.f32 1.0, %v994
    %v996 = vtanh.pop %v976
    %v998 = vrot.slane %v939, 4
    %v1000 = vmul.f32 %v995, %v998
    %1002 = vrot.lane.b32.xlu0 %v996, 64
    %v1003 = vpop.permute.xlu0 %1002
    %v1005 = vmul.f32 %v995, %v1003
    %1007 = vrot.lane.b32.xlu0 %v1005, 32
    %v1008 = vpop.permute.xlu0 %1007
    %v1010 = vadd.f32 %v1000, %v1008
    %v1011 = vtanh.pop %v1010
    %1013 = vrot.lane.b32.xlu0 %v1011, 64
    %v1014 = vpop.permute.xlu0 %1013
    %v1016 = vmul.f32 %v995, %v1014
    %1018 = vrot.lane.b32.xlu0 %v1016, 32
    %v1019 = vpop.permute.xlu0 %1018
    %1021 = vst.msk [vmem:[#allocation2 + $0x8] sm:$0xf0] %vm244, %v1019
    %v1022 = vrot.slane %v1016, 4
    %1023 = vrot.lane.b32.xlu0 %v1022, 32
    %v1024 = vpop.permute.xlu0 %1023
    %v1025 = vsel %vm59, %v1024, 0
    %1027 = vmatpush.msra.mxu0 0.0
    %1028 = vmatpush.msra.mxu0 0.0
    %1029 = vmatpush.msra.mxu0 0.0
    %1030 = vmatpush.msra.mxu0 0.0
    %1031 = vmatpush.msra.mxu0 0.0
    %1032 = vmatpush.msra.mxu0 0.0
    %1033 = vmatpush.msra.mxu0 0.0
    %1034 = vmatpush.msra.mxu0 0.0
    %1035 = vmatpush.msra.mxu0 0.0
    %1036 = vmatpush.msra.mxu0 0.0
    %1037 = vmatpush.msra.mxu0 0.0
    %1038 = vmatpush.msra.mxu0 0.0
    %1039 = vmatpush.msra.mxu0 %v689
    %1040 = vmatpush.msra.mxu0 %v688
    %1041 = vmatpush.msra.mxu0 %v687
    %1042 = vmatpush.msra.mxu0 %v686
    %1043 = vmatmul.f32.gmra.mxu0 %v1025
    %v1044 = vpop.f32.mrf.mxu0
    %v1045 = vadd.f32 0.0, %v1044
    %1046 = vdwg.mxu0
    %v1047 = vadd.f32 %v730, %v1045
    %v1048 = vxor.u32 %v1047, 2147483648
    %v1049 = vmul.f32 %v1048, 1.442695
    %v1050 = vpow.pop %v1049
    %v1051 = vadd.f32 %v1050, 1.0
    %v1052 = vrcp.pop %v1051
    %v1053 = vmul.f32 %v1051, %v1052
    %v1054 = vsub.f32 1.0, %v1053
    %v1055 = vmul.f32 %v1052, %v1054
    %v1056 = vadd.f32 %v1052, %v1055
    %vm1057 = vweird.f32 %v1051
    %vm1058 = vweird.f32 %v1052
    %vm1059 = vmor %vm1057, %vm1058
    %v1060 = vsel %vm1059, %v1052, %v1056
    %v1061 = vand.u32 2147483647, %v1051
    %vm1062 = vcmp.eq.f32.partialorder %v1061, 8.507059e+37
    %v1063 = vand.u32 %v1051, 2147483648
    %v1064 = vor.u32 1.1754944e-38, %v1063
    %v1065 = vsel %vm1062, %v1064, %v1060
    %v1066 = vmul.f32 1.0, %v1065
    %v1067 = vtanh.pop %v1047
    %v1069 = vrot.slane %v1010, 4
    %v1071 = vmul.f32 %v1066, %v1069
    %1073 = vrot.lane.b32.xlu0 %v1067, 64
    %v1074 = vpop.permute.xlu0 %1073
    %v1076 = vmul.f32 %v1066, %v1074
    %1078 = vrot.lane.b32.xlu0 %v1076, 32
    %v1079 = vpop.permute.xlu0 %1078
    %v1081 = vadd.f32 %v1071, %v1079
    %v1082 = vtanh.pop %v1081
    %1084 = vrot.lane.b32.xlu0 %v1082, 64
    %v1085 = vpop.permute.xlu0 %1084
    %v1087 = vmul.f32 %v1066, %v1085
    %1089 = vrot.lane.b32.xlu0 %v1087, 32
    %v1090 = vpop.permute.xlu0 %1089
    %1092 = vst.msk [vmem:[#allocation2 + $0x10] sm:$0xf] %vm172, %v1090
    %v1093 = vsel %vm59, %v1090, 0
    %1095 = vmatpush.msra.mxu0 0.0
    %1096 = vmatpush.msra.mxu0 0.0
    %1097 = vmatpush.msra.mxu0 0.0
    %1098 = vmatpush.msra.mxu0 0.0
    %1099 = vmatpush.msra.mxu0 0.0
    %1100 = vmatpush.msra.mxu0 0.0
    %1101 = vmatpush.msra.mxu0 0.0
    %1102 = vmatpush.msra.mxu0 0.0
    %1103 = vmatpush.msra.mxu0 0.0
    %1104 = vmatpush.msra.mxu0 0.0
    %1105 = vmatpush.msra.mxu0 0.0
    %1106 = vmatpush.msra.mxu0 0.0
    %1107 = vmatpush.msra.mxu0 %v689
    %1108 = vmatpush.msra.mxu0 %v688
    %1109 = vmatpush.msra.mxu0 %v687
    %1110 = vmatpush.msra.mxu0 %v686
    %1111 = vmatmul.f32.gmra.mxu0 %v1093
    %v1112 = vpop.f32.mrf.mxu0
    %v1113 = vadd.f32 0.0, %v1112
    %1114 = vdwg.mxu0
    %v1116 = vrot.slane %v1113, 4
    %v1118 = vadd.f32 %v730, %v1116
    %v1119 = vxor.u32 %v1118, 2147483648
    %v1120 = vmul.f32 %v1119, 1.442695
    %v1121 = vpow.pop %v1120
    %v1122 = vadd.f32 %v1121, 1.0
    %v1123 = vrcp.pop %v1122
    %v1124 = vmul.f32 %v1122, %v1123
    %v1125 = vsub.f32 1.0, %v1124
    %v1126 = vmul.f32 %v1123, %v1125
    %v1127 = vadd.f32 %v1123, %v1126
    %vm1128 = vweird.f32 %v1122
    %vm1129 = vweird.f32 %v1123
    %vm1130 = vmor %vm1128, %vm1129
    %v1131 = vsel %vm1130, %v1123, %v1127
    %v1132 = vand.u32 2147483647, %v1122
    %vm1133 = vcmp.eq.f32.partialorder %v1132, 8.507059e+37
    %v1134 = vand.u32 %v1122, 2147483648
    %v1135 = vor.u32 1.1754944e-38, %v1134
    %v1136 = vsel %vm1133, %v1135, %v1131
    %v1137 = vmul.f32 1.0, %v1136
    %v1138 = vtanh.pop %v1118
    %v1140 = vrot.slane %v1081, 4
    %v1142 = vmul.f32 %v1137, %v1140
    %1144 = vrot.lane.b32.xlu0 %v1138, 64
    %v1145 = vpop.permute.xlu0 %1144
    %v1147 = vmul.f32 %v1137, %v1145
    %1149 = vrot.lane.b32.xlu0 %v1147, 32
    %v1150 = vpop.permute.xlu0 %1149
    %v1152 = vadd.f32 %v1142, %v1150
    %v1153 = vtanh.pop %v1152
    %1155 = vrot.lane.b32.xlu0 %v1153, 64
    %v1156 = vpop.permute.xlu0 %1155
    %v1158 = vmul.f32 %v1137, %v1156
    %1160 = vrot.lane.b32.xlu0 %v1158, 32
    %v1161 = vpop.permute.xlu0 %1160
    %1163 = vst.msk [vmem:[#allocation2 + $0x10] sm:$0xf0] %vm244, %v1161
    %v1164 = vrot.slane %v1158, 4
    %1165 = vrot.lane.b32.xlu0 %v1164, 32
    %v1166 = vpop.permute.xlu0 %1165
    %v1167 = vsel %vm59, %v1166, 0
    %1169 = vmatpush.msra.mxu0 0.0
    %1170 = vmatpush.msra.mxu0 0.0
    %1171 = vmatpush.msra.mxu0 0.0
    %1172 = vmatpush.msra.mxu0 0.0
    %1173 = vmatpush.msra.mxu0 0.0
    %1174 = vmatpush.msra.mxu0 0.0
    %1175 = vmatpush.msra.mxu0 0.0
    %1176 = vmatpush.msra.mxu0 0.0
    %1177 = vmatpush.msra.mxu0 0.0
    %1178 = vmatpush.msra.mxu0 0.0
    %1179 = vmatpush.msra.mxu0 0.0
    %1180 = vmatpush.msra.mxu0 0.0
    %1181 = vmatpush.msra.mxu0 %v689
    %1182 = vmatpush.msra.mxu0 %v688
    %1183 = vmatpush.msra.mxu0 %v687
    %1184 = vmatpush.msra.mxu0 %v686
    %1185 = vmatmul.f32.gmra.mxu0 %v1167
    %v1186 = vpop.f32.mrf.mxu0
    %v1187 = vadd.f32 0.0, %v1186
    %1188 = vdwg.mxu0
    %v1189 = vadd.f32 %v733, %v1187
    %v1190 = vxor.u32 %v1189, 2147483648
    %v1191 = vmul.f32 %v1190, 1.442695
    %v1192 = vpow.pop %v1191
    %v1193 = vadd.f32 %v1192, 1.0
    %v1194 = vrcp.pop %v1193
    %v1195 = vmul.f32 %v1193, %v1194
    %v1196 = vsub.f32 1.0, %v1195
    %v1197 = vmul.f32 %v1194, %v1196
    %v1198 = vadd.f32 %v1194, %v1197
    %vm1199 = vweird.f32 %v1193
    %vm1200 = vweird.f32 %v1194
    %vm1201 = vmor %vm1199, %vm1200
    %v1202 = vsel %vm1201, %v1194, %v1198
    %v1203 = vand.u32 2147483647, %v1193
    %vm1204 = vcmp.eq.f32.partialorder %v1203, 8.507059e+37
    %v1205 = vand.u32 %v1193, 2147483648
    %v1206 = vor.u32 1.1754944e-38, %v1205
    %v1207 = vsel %vm1204, %v1206, %v1202
    %v1208 = vmul.f32 1.0, %v1207
    %v1209 = vtanh.pop %v1189
    %v1211 = vrot.slane %v1152, 4
    %v1213 = vmul.f32 %v1208, %v1211
    %1215 = vrot.lane.b32.xlu0 %v1209, 64
    %v1216 = vpop.permute.xlu0 %1215
    %v1218 = vmul.f32 %v1208, %v1216
    %1220 = vrot.lane.b32.xlu0 %v1218, 32
    %v1221 = vpop.permute.xlu0 %1220
    %v1223 = vadd.f32 %v1213, %v1221
    %v1224 = vtanh.pop %v1223
    %1226 = vrot.lane.b32.xlu0 %v1224, 64
    %v1227 = vpop.permute.xlu0 %1226
    %v1229 = vmul.f32 %v1208, %v1227
    %1231 = vrot.lane.b32.xlu0 %v1229, 32
    %v1232 = vpop.permute.xlu0 %1231
    %1234 = vst.msk [vmem:[#allocation2 + $0x18] sm:$0xf] %vm172, %v1232
    %v1235 = vsel %vm59, %v1232, 0
    %1237 = vmatpush.msra.mxu0 0.0
    %1238 = vmatpush.msra.mxu0 0.0
    %1239 = vmatpush.msra.mxu0 0.0
    %1240 = vmatpush.msra.mxu0 0.0
    %1241 = vmatpush.msra.mxu0 0.0
    %1242 = vmatpush.msra.mxu0 0.0
    %1243 = vmatpush.msra.mxu0 0.0
    %1244 = vmatpush.msra.mxu0 0.0
    %1245 = vmatpush.msra.mxu0 0.0
    %1246 = vmatpush.msra.mxu0 0.0
    %1247 = vmatpush.msra.mxu0 0.0
    %1248 = vmatpush.msra.mxu0 0.0
    %1249 = vmatpush.msra.mxu0 %v689
    %1250 = vmatpush.msra.mxu0 %v688
    %1251 = vmatpush.msra.mxu0 %v687
    %1252 = vmatpush.msra.mxu0 %v686
    %1253 = vmatmul.f32.gmra.mxu0 %v1235
    %v1254 = vpop.f32.mrf.mxu0
    %v1255 = vadd.f32 0.0, %v1254
    %1256 = vdwg.mxu0
    %v1258 = vrot.slane %v1255, 4
    %v1260 = vadd.f32 %v733, %v1258
    %v1261 = vxor.u32 %v1260, 2147483648
    %v1262 = vmul.f32 %v1261, 1.442695
    %v1263 = vpow.pop %v1262
    %v1264 = vadd.f32 %v1263, 1.0
    %v1265 = vrcp.pop %v1264
    %v1266 = vmul.f32 %v1264, %v1265
    %v1267 = vsub.f32 1.0, %v1266
    %v1268 = vmul.f32 %v1265, %v1267
    %v1269 = vadd.f32 %v1265, %v1268
    %vm1270 = vweird.f32 %v1264
    %vm1271 = vweird.f32 %v1265
    %vm1272 = vmor %vm1270, %vm1271
    %v1273 = vsel %vm1272, %v1265, %v1269
    %v1274 = vand.u32 2147483647, %v1264
    %vm1275 = vcmp.eq.f32.partialorder %v1274, 8.507059e+37
    %v1276 = vand.u32 %v1264, 2147483648
    %v1277 = vor.u32 1.1754944e-38, %v1276
    %v1278 = vsel %vm1275, %v1277, %v1273
    %v1279 = vmul.f32 1.0, %v1278
    %v1280 = vtanh.pop %v1260
    %v1282 = vrot.slane %v1223, 4
    %v1284 = vmul.f32 %v1279, %v1282
    %1286 = vrot.lane.b32.xlu0 %v1280, 64
    %v1287 = vpop.permute.xlu0 %1286
    %v1289 = vmul.f32 %v1279, %v1287
    %1291 = vrot.lane.b32.xlu0 %v1289, 32
    %v1292 = vpop.permute.xlu0 %1291
    %v1294 = vadd.f32 %v1284, %v1292
    %v1295 = vtanh.pop %v1294
    %1297 = vrot.lane.b32.xlu0 %v1295, 64
    %v1298 = vpop.permute.xlu0 %1297
    %v1300 = vmul.f32 %v1279, %v1298
    %1302 = vrot.lane.b32.xlu0 %v1300, 32
    %v1303 = vpop.permute.xlu0 %1302
    %1305 = vst.msk [vmem:[#allocation2 + $0x18] sm:$0xf0] %vm244, %v1303
    %s1306 = scalar_lea.vmem [#allocation5], 4
    %1307 = vst.msk [vmem:[%s1306 - $0x4] sm:$0xf0] %vm244, %v1303
    %1309 = vrot.lane.b32.xlu0 %v1294, 96
    %v1310 = vpop.permute.xlu0 %1309
    %s1312 = scalar_lea.vmem [#allocation7], 4
    %1313 = vst.msk [vmem:[%s1312 - $0x4] sm:$0xf0] %vm244, %v1310
    %v1314 = vld [vmem:[#allocation2] sm:$0xff]
    %v1315 = vld [vmem:[#allocation2 + $0x8] sm:$0xff]
    %v1316 = vld [vmem:[#allocation2 + $0x10] sm:$0xff]
    %v1317 = vld [vmem:[#allocation2 + $0x18] sm:$0xff]
    %v1318 = vld [vmem:[%s7] sm:$0xff]
    %v1319 = vld [vmem:[%s7 + $0x8] sm:$0xff]
    %v1320 = vld [vmem:[%s7 + $0x10] sm:$0xff]
    %v1321 = vld [vmem:[%s7 + $0x18] sm:$0xff]
    %v1322 = vld [vmem:[%s8] sm:$0x1]
    %v1324 = vperm.slane %v1322, 0
    %v1327 = vsel %vm59, %v1314, 0
    %v1330 = vsel %vm59, %v1315, 0
    %v1333 = vsel %vm59, %v1316, 0
    %v1336 = vsel %vm59, %v1317, 0
    %1338 = vmatpush.msra.mxu0 0.0
    %1339 = vmatpush.msra.mxu0 0.0
    %1340 = vmatpush.msra.mxu0 0.0
    %1341 = vmatpush.msra.mxu0 0.0
    %1342 = vmatpush.msra.mxu0 0.0
    %1343 = vmatpush.msra.mxu0 0.0
    %1344 = vmatpush.msra.mxu0 0.0
    %1345 = vmatpush.msra.mxu0 0.0
    %1346 = vmatpush.msra.mxu0 0.0
    %1347 = vmatpush.msra.mxu0 0.0
    %1348 = vmatpush.msra.mxu0 0.0
    %1349 = vmatpush.msra.mxu0 0.0
    %1350 = vmatpush.msra.mxu0 %v1321
    %1351 = vmatpush.msra.mxu0 %v1320
    %1352 = vmatpush.msra.mxu0 %v1319
    %1353 = vmatpush.msra.mxu0 %v1318
    %1354 = vmatmul.f32.gmra.mxu0 %v1327
    %v1355 = vpop.f32.mrf.mxu0
    %v1356 = vadd.f32 %v1324, %v1355
    %1357 = vmatmul.f32.gmra.mxu0 %v1330
    %v1358 = vpop.f32.mrf.mxu0
    %v1359 = vadd.f32 %v1324, %v1358
    %1360 = vmatmul.f32.gmra.mxu0 %v1333
    %v1361 = vpop.f32.mrf.mxu0
    %v1362 = vadd.f32 %v1324, %v1361
    %1363 = vmatmul.f32.gmra.mxu0 %v1336
    %v1364 = vpop.f32.mrf.mxu0
    %v1365 = vadd.f32 %v1324, %v1364
    %1366 = vdwg.mxu0
    %1367 = vmax.xlane.f32.xlu0 %v1356
    %v1368 = vpop.xlane.xlu0 %1367
    %1369 = vmax.xlane.f32.xlu0 %v1359
    %v1370 = vpop.xlane.xlu0 %1369
    %1371 = vmax.xlane.f32.xlu0 %v1362
    %v1372 = vpop.xlane.xlu0 %1371
    %1373 = vmax.xlane.f32.xlu0 %v1365
    %v1374 = vpop.xlane.xlu0 %1373
    %v1375 = vsub.f32 %v1356, %v1368
    %v1376 = vsub.f32 %v1359, %v1370
    %v1377 = vsub.f32 %v1362, %v1372
    %v1378 = vsub.f32 %v1365, %v1374
    %v1379 = vmul.f32 %v1375, 1.442695
    %v1380 = vpow.pop %v1379
    %v1381 = vmul.f32 %v1376, 1.442695
    %v1382 = vpow.pop %v1381
    %v1383 = vmul.f32 %v1377, 1.442695
    %v1384 = vpow.pop %v1383
    %v1385 = vmul.f32 %v1378, 1.442695
    %v1386 = vpow.pop %v1385
    %1387 = vadd.xlane.f32.xlu0 %v1380
    %v1388 = vpop.xlane.xlu0 %1387
    %1389 = vadd.xlane.f32.xlu0 %v1382
    %v1390 = vpop.xlane.xlu0 %1389
    %1391 = vadd.xlane.f32.xlu0 %v1384
    %v1392 = vpop.xlane.xlu0 %1391
    %1393 = vadd.xlane.f32.xlu0 %v1386
    %v1394 = vpop.xlane.xlu0 %1393
    %v1395 = vlog2.pop %v1388
    %v1396 = vmul.f32 %v1395, 0.6931472
    %v1397 = vlog2.pop %v1390
    %v1398 = vmul.f32 %v1397, 0.6931472
    %v1399 = vlog2.pop %v1392
    %v1400 = vmul.f32 %v1399, 0.6931472
    %v1401 = vlog2.pop %v1394
    %v1402 = vmul.f32 %v1401, 0.6931472
    %v1403 = vsub.f32 %v1375, %v1396
    %v1404 = vsub.f32 %v1376, %v1398
    %v1405 = vsub.f32 %v1377, %v1400
    %v1406 = vsub.f32 %v1378, %v1402
    %1407 = vst [vmem:[#allocation3] sm:$0xff] %v1403
    %1408 = vst [vmem:[#allocation3 + $0x8] sm:$0xff] %v1404
    %1409 = vst [vmem:[#allocation3 + $0x10] sm:$0xff] %v1405
    %1410 = vst [vmem:[#allocation3 + $0x18] sm:$0xff] %v1406
    // Predicated region
    $region46: #{rnn_model_forward.1} parent=1 // pred_check
      _
    $region47: #{rnn_model_forward.1} parent=1 // pred_check_branch
      %1412 = sbr.rel (0) target = $region49
    $region48: #{rnn_model_forward.1} parent=1 // pred_region
      %1414 = vsyncadd [#allocation4], 0
      %s1415 = sshll.u32 [#allocation3], 4
      %s1416 = int_to_ptr.vmem [resolvable:$true] %s1415
      %s1417 = sshll.u32 %s11, 4
      %s1418 = int_to_ptr.hbm [resolvable:$true] %s1417
      %1423 = dma.vmem_to_hbm [thread:$0]  %s1416, 512, %s1418, [#allocation4], 128, 128, 8
    $region49: #{rnn_model_forward.1} parent=1 // pred_fallthru
      _
    // Predicated region
    $region50: #{rnn_model_forward.1} parent=1 // pred_check
      _
    $region51: #{rnn_model_forward.1} parent=1 // pred_check_branch
      %1425 = sbr.rel (0) target = $region53
    $region52: #{rnn_model_forward.1} parent=1 // pred_region
      %1427 = vsyncadd [#allocation6], 0
      %s1428 = sshll.u32 [#allocation5], 4
      %s1429 = int_to_ptr.vmem [resolvable:$true] %s1428
      %s1430 = sshll.u32 %s12, 4
      %s1431 = int_to_ptr.hbm [resolvable:$true] %s1430
      %1436 = dma.vmem_to_hbm [thread:$0]  %s1429, 128, %s1431, [#allocation6], 64, 64, 4
    $region53: #{rnn_model_forward.1} parent=1 // pred_fallthru
      _
    // Predicated region
    $region54: #{rnn_model_forward.1} parent=1 // pred_check
      _
    $region55: #{rnn_model_forward.1} parent=1 // pred_check_branch
      %1438 = sbr.rel (0) target = $region57
    $region56: #{rnn_model_forward.1} parent=1 // pred_region
      %1440 = vsyncadd [#allocation6], 0
      %s1441 = sshll.u32 [#allocation7], 4
      %s1442 = int_to_ptr.vmem [resolvable:$true] %s1441
      %s1443 = sshll.u32 %s13, 4
      %s1444 = int_to_ptr.hbm [resolvable:$true] %s1443
      %1449 = dma.vmem_to_hbm [thread:$0]  %s1442, 128, %s1444, [#allocation6], 64, 64, 4
    $region57: #{rnn_model_forward.1} parent=1 // pred_fallthru
      _
    // Predicated region
    $region58: #{rnn_model_forward.1} parent=1 // pred_check
      _
    $region59: #{rnn_model_forward.1} parent=1 // pred_check_branch
      %1451 = sbr.rel (0) target = $region61
    $region60: #{rnn_model_forward.1} parent=1 // pred_region
      %1453 = dma.done [#allocation4], 512
    $region61: #{rnn_model_forward.1} parent=1 // pred_fallthru
      _
    // Predicated region
    $region62: #{rnn_model_forward.1} parent=1 // pred_check
      _
    $region63: #{rnn_model_forward.1} parent=1 // pred_check_branch
      %1455 = sbr.rel (0) target = $region65
    $region64: #{rnn_model_forward.1} parent=1 // pred_region
      %1457 = dma.done [#allocation6], 128
    $region65: #{rnn_model_forward.1} parent=1 // pred_fallthru
      _
    // Predicated region
    $region66: #{rnn_model_forward.1} parent=1 // pred_check
      _
    $region67: #{rnn_model_forward.1} parent=1 // pred_check_branch
      %1459 = sbr.rel (0) target = $region69
    $region68: #{rnn_model_forward.1} parent=1 // pred_region
      %1461 = dma.done [#allocation6], 128
    $region69: #{rnn_model_forward.1} parent=1 // pred_fallthru
      _
    %1462 = vsyncpa [#allocation4], 1
    %1463 = vsyncpa [#allocation6], 1

</llo_original>
